<compile_context>
chip_gen: v5e
topology: v5e:2x2
jax: 0.10.0
libtpu: 0.0.40
codegen_flags: <defaults>
</compile_context>

<pallas_src>
import numpy as np

import jax
import jax.numpy as jnp
from jax import lax
from jax.experimental import pallas as pl
from jax.experimental.pallas import tpu as pltpu


_BLOCK_M = 512                               # default row (token) tile
_SQRT_2_OVER_PI = 0.7978845608028654         # Python literals, never traced
_GELU_COEFF = 0.044715
_INV_SQRT2 = float(1.0 / np.sqrt(2.0))       # for the exact-erf reference


def _ffn_kernel(x_ref, w1_ref, b1_ref, w2_ref, b2_ref, o_ref):
    """One row tile of Linear(D,H) -> GELU(tanh approx) -> Linear(H,D)."""
    # bf16 MXU operands, f32 accumulation.
    x = x_ref[...].astype(jnp.bfloat16)
    h = jnp.dot(x, w1_ref[...], preferred_element_type=jnp.float32)
    h = h + b1_ref[...]                       # f32 bias add (broadcast over rows)
    # tanh-approximate GELU in f32: tanh goes to the EUP slot, VALU stays light.
    g = 0.5 * h * (1.0 + jnp.tanh(_SQRT_2_OVER_PI * (h + _GELU_COEFF * h * h * h)))
    o = jnp.dot(g.astype(jnp.bfloat16), w2_ref[...],
                preferred_element_type=jnp.float32)
    o = o + b2_ref[...]
    o_ref[...] = o.astype(o_ref.dtype)


def _pick_row_tile(m, block_m):
    """Row tile: multiple of 8, <= block_m, and grid >= 2 whenever m > 8."""
    if m <= 8:
        return m                              # single tiny full-array block
    half = pl.cdiv(m, 2)
    half_rounded = ((half + 7) // 8) * 8      # keep sublane (8) alignment
    return min(block_m, half_rounded)


def pallas_feedforward(x, w1, b1, w2, b2, *, block_m=_BLOCK_M):
    """FeedForward: x[..., D] -> Linear(D,H) -> GELU -> Linear(H,D) -> [..., D]."""
    orig_shape = x.shape
    D = orig_shape[-1]
    H = w1.shape[1]
    M = int(np.prod(orig_shape[:-1]))
    x2 = x.reshape(M, D)

    tm = _pick_row_tile(M, block_m)
    grid = (pl.cdiv(M, tm),)                  # partial last block: writes masked

    # bf16 weights: halve resident-weight DMA and feed the MXU natively.
    w1b = w1.astype(jnp.bfloat16)
    w2b = w2.astype(jnp.bfloat16)

    out = pl.pallas_call(
        _ffn_kernel,
        out_shape=jax.ShapeDtypeStruct((M, D), x.dtype),
        grid=grid,
        in_specs=[
            pl.BlockSpec((tm, D), lambda i: (i, 0)),   # activation row tile
            pl.BlockSpec((D, H), lambda i: (0, 0)),    # W1 (resident, bf16)
            pl.BlockSpec((1, H), lambda i: (0, 0)),    # b1 (f32)
            pl.BlockSpec((H, D), lambda i: (0, 0)),    # W2 (resident, bf16)
            pl.BlockSpec((1, D), lambda i: (0, 0)),    # b2 (f32)
        ],
        out_specs=pl.BlockSpec((tm, D), lambda i: (i, 0)),
        compiler_params=pltpu.CompilerParams(dimension_semantics=("parallel",)),
    )(x2, w1b, b1.reshape(1, H), w2b, b2.reshape(1, D))

    return out.reshape(orig_shape)


def feedforward_reference(x, w1, b1, w2, b2):
    """Pure-JAX f32 reference matching nn.Linear -> nn.GELU() (exact erf) -> nn.Linear."""
    h = jnp.dot(x, w1) + b1
    h = 0.5 * h * (1.0 + lax.erf(h * _INV_SQRT2))
    return jnp.dot(h, w2) + b2


if __name__ == "__main__":
    key = jax.random.PRNGKey(0)
    kx, kw1, kb1, kw2, kb2, ky = jax.random.split(key, 6)

    # FeedForward(dim=128, hidden_dim=512) on [B, H, W, dim] tokens.
    # M = 2*16*16 = 512 -> tm=256, grid=(2,): both v7x TensorCores busy,
    # lane-dense (128/512-lane) tiles, no padding, no pad/slice passes.
    B, HS, WS, DIM, HID = 2, 16, 16, 128, 512
    x = jax.random.normal(kx, (B, HS, WS, DIM), jnp.float32)
    w1 = jax.random.normal(kw1, (DIM, HID), jnp.float32) * 0.02
    b1 = jax.random.normal(kb1, (HID,), jnp.float32) * 0.02
    w2 = jax.random.normal(kw2, (HID, DIM), jnp.float32) * 0.02
    b2 = jax.random.normal(kb2, (DIM,), jnp.float32) * 0.02

    out = jax.jit(pallas_feedforward)(x, w1, b1, w2, b2)
    jax.block_until_ready(out)
    ref = feedforward_reference(x, w1, b1, w2, b2)
    assert out.shape == x.shape
    assert bool(jnp.isfinite(out).all())
    err = float(jnp.max(jnp.abs(out - ref)))
    assert err < 2e-2, f"max abs err {err}"

    # Ragged case (21 tokens, dim=48): tm=16, grid=(2,), partial last block
    # exercises the masked-write (no pad / no slice) path.
    xs = jax.random.normal(ky, (3, 7, 48), jnp.float32)
    w1s = jax.random.normal(kw1, (48, 192), jnp.float32) * 0.05
    b1s = jnp.zeros((192,), jnp.float32)
    w2s = jax.random.normal(kw2, (192, 48), jnp.float32) * 0.05
    b2s = jnp.zeros((48,), jnp.float32)
    outs = jax.jit(pallas_feedforward)(xs, w1s, b1s, w2s, b2s)
    jax.block_until_ready(outs)
    refs = feedforward_reference(xs, w1s, b1s, w2s, b2s)
    assert outs.shape == xs.shape
    assert bool(jnp.isfinite(outs).all())
    errs = float(jnp.max(jnp.abs(outs - refs)))
    assert errs < 2e-2, f"max abs err {errs}"

    print("KERNEL_OK")
</pallas_src>

<mosaic_0001>
module attributes {stable_mosaic.version = 11 : i64} {
  func.func @_ffn_kernel(%arg0: i32, %arg1: memref<256x128xf32, #tpu.memory_space<vmem>>, %arg2: memref<128x512xbf16, #tpu.memory_space<vmem>>, %arg3: memref<1x512xf32, #tpu.memory_space<vmem>>, %arg4: memref<512x128xbf16, #tpu.memory_space<vmem>>, %arg5: memref<1x128xf32, #tpu.memory_space<vmem>>, %arg6: memref<256x128xf32, #tpu.memory_space<vmem>>) attributes {dimension_semantics = [#tpu.dimension_semantics<parallel>], iteration_bounds = array<i64: 2>, scalar_prefetch = 0 : i64, scratch_operands = 0 : i64, tpu.core_type = #tpu.core_type<tc>, window_params = [{transform_indices = @transform_0, window_bounds = array<i64: 256, 128>}, {pipeline_mode = #tpu.pipeline_mode<synchronous>, transform_indices = @transform_1, window_bounds = array<i64: 128, 512>}, {pipeline_mode = #tpu.pipeline_mode<synchronous>, transform_indices = @transform_2, window_bounds = array<i64: 1, 512>}, {pipeline_mode = #tpu.pipeline_mode<synchronous>, transform_indices = @transform_3, window_bounds = array<i64: 512, 128>}, {pipeline_mode = #tpu.pipeline_mode<synchronous>, transform_indices = @transform_4, window_bounds = array<i64: 1, 128>}, {transform_indices = @transform_5, window_bounds = array<i64: 256, 128>}]} {
    %c0 = arith.constant 0 : index
    %c0_0 = arith.constant 0 : index
    %0 = vector.load %arg1[%c0, %c0_0] : memref<256x128xf32, #tpu.memory_space<vmem>>, vector<256x128xf32>
    %1 = arith.truncf %0 : vector<256x128xf32> to vector<256x128xbf16>
    %c0_1 = arith.constant 0 : index
    %c0_2 = arith.constant 0 : index
    %2 = vector.load %arg2[%c0_1, %c0_2] : memref<128x512xbf16, #tpu.memory_space<vmem>>, vector<128x512xbf16>
    %cst = arith.constant dense<0.000000e+00> : vector<256x512xf32>
    %3 = tpu.matmul %1, %2, %cst {dimension_numbers = #tpu.dot_dimension_numbers<[1], [0], [0], [1], [0, 0, 1, 1], [], []>} : vector<256x128xbf16>, vector<128x512xbf16>, vector<256x512xf32> -> vector<256x512xf32>
    %c0_3 = arith.constant 0 : index
    %c0_4 = arith.constant 0 : index
    %4 = vector.load %arg3[%c0_3, %c0_4] : memref<1x512xf32, #tpu.memory_space<vmem>>, vector<1x512xf32>
    %5 = vector.broadcast %4 : vector<1x512xf32> to vector<256x512xf32>
    %6 = arith.addf %3, %5 : vector<256x512xf32>
    %cst_5 = arith.constant 5.000000e-01 : f32
    %7 = vector.broadcast %cst_5 : f32 to vector<256x512xf32>
    %8 = arith.mulf %7, %6 : vector<256x512xf32>
    %cst_6 = arith.constant 4.471500e-02 : f32
    %9 = vector.broadcast %cst_6 : f32 to vector<256x512xf32>
    %10 = arith.mulf %9, %6 : vector<256x512xf32>
    %11 = arith.mulf %10, %6 : vector<256x512xf32>
    %12 = arith.mulf %11, %6 : vector<256x512xf32>
    %13 = arith.addf %6, %12 : vector<256x512xf32>
    %cst_7 = arith.constant 0.797884583 : f32
    %14 = vector.broadcast %cst_7 : f32 to vector<256x512xf32>
    %15 = arith.mulf %14, %13 : vector<256x512xf32>
    %16 = math.tanh %15 : vector<256x512xf32>
    %cst_8 = arith.constant 1.000000e+00 : f32
    %17 = vector.broadcast %cst_8 : f32 to vector<256x512xf32>
    %18 = arith.addf %17, %16 : vector<256x512xf32>
    %19 = arith.mulf %8, %18 : vector<256x512xf32>
    %20 = arith.truncf %19 : vector<256x512xf32> to vector<256x512xbf16>
    %c0_9 = arith.constant 0 : index
    %c0_10 = arith.constant 0 : index
    %21 = vector.load %arg4[%c0_9, %c0_10] : memref<512x128xbf16, #tpu.memory_space<vmem>>, vector<512x128xbf16>
    %cst_11 = arith.constant dense<0.000000e+00> : vector<256x128xf32>
    %22 = tpu.matmul %20, %21, %cst_11 {dimension_numbers = #tpu.dot_dimension_numbers<[1], [0], [0], [1], [0, 0, 1, 1], [], []>} : vector<256x512xbf16>, vector<512x128xbf16>, vector<256x128xf32> -> vector<256x128xf32>
    %c0_12 = arith.constant 0 : index
    %c0_13 = arith.constant 0 : index
    %23 = vector.load %arg5[%c0_12, %c0_13] : memref<1x128xf32, #tpu.memory_space<vmem>>, vector<1x128xf32>
    %24 = vector.broadcast %23 : vector<1x128xf32> to vector<256x128xf32>
    %25 = arith.addf %22, %24 : vector<256x128xf32>
    %c0_14 = arith.constant 0 : index
    %c0_15 = arith.constant 0 : index
    %26 = vector.load %arg6[%c0_14, %c0_15] : memref<256x128xf32, #tpu.memory_space<vmem>>, vector<256x128xf32>
    tpu.vector_store %arg6[%c0_14, %c0_15], %25 {strides = array<i32>} : memref<256x128xf32, #tpu.memory_space<vmem>>, vector<256x128xf32>,
    return
  }
  func.func @transform_0(%arg0: i32) -> (i32, i32) {
    %c0_i32 = arith.constant 0 : i32
    %c0_i32_0 = arith.constant 0 : i32
    return %arg0, %c0_i32 : i32, i32
  }
  func.func @transform_1(%arg0: i32) -> (i32, i32) {
    %c0_i32 = arith.constant 0 : i32
    %c0_i32_0 = arith.constant 0 : i32
    %c0_i32_1 = arith.constant 0 : i32
    return %c0_i32, %c0_i32_0 : i32, i32
  }
  func.func @transform_2(%arg0: i32) -> (i32, i32) {
    %c0_i32 = arith.constant 0 : i32
    %c0_i32_0 = arith.constant 0 : i32
    %c0_i32_1 = arith.constant 0 : i32
    return %c0_i32, %c0_i32_0 : i32, i32
  }
  func.func @transform_3(%arg0: i32) -> (i32, i32) {
    %c0_i32 = arith.constant 0 : i32
    %c0_i32_0 = arith.constant 0 : i32
    %c0_i32_1 = arith.constant 0 : i32
    return %c0_i32, %c0_i32_0 : i32, i32
  }
  func.func @transform_4(%arg0: i32) -> (i32, i32) {
    %c0_i32 = arith.constant 0 : i32
    %c0_i32_0 = arith.constant 0 : i32
    %c0_i32_1 = arith.constant 0 : i32
    return %c0_i32, %c0_i32_0 : i32, i32
  }
  func.func @transform_5(%arg0: i32) -> (i32, i32) {
    %c0_i32 = arith.constant 0 : i32
    %c0_i32_0 = arith.constant 0 : i32
    return %arg0, %c0_i32 : i32, i32
  }
}

</mosaic_0001>

<llo_original>
// kernel: pallas_feedforward.1
$region0: #{pallas_feedforward.1}
  #allocation0 [shape = 'u32[]', space=smem, size = 0x4, offset = 0x4, fixed_abs, tag = 'smem constant byte address 0x4 - core index']
  #allocation1 [shape = 'u32[72,128]{1,0:T(1,128)}', space=vmem, size = 0x9000, scoped, tag = 'internal scratch']
  %s0 = inlined_call_operand.vmem [shape: f32[512,128], index: 0, kind: input, shape index: {}]
  %s1 = inlined_call_operand.vmem [shape: bf16[128,512], index: 1, kind: input, shape index: {}]
  %s2 = inlined_call_operand.vmem [shape: f32[1,512], index: 2, kind: input, shape index: {}]
  %s3 = inlined_call_operand.vmem [shape: bf16[512,128], index: 3, kind: input, shape index: {}]
  %s4 = inlined_call_operand.vmem [shape: f32[1,128], index: 4, kind: input, shape index: {}]
  %s5 = inlined_call_operand.hbm [shape: f32[512,128], index: 5, kind: output, shape index: {}]
  %s6 = sld [smem:[#allocation0]]
  $region53: #{pallas_feedforward.1} parent=0
    _
  %s8 = ssub.s32 1, %s6
  %s9 = scalar_select 0, %s8, %s6
  $region1: #{pallas_feedforward.1} parent=0
    #allocation2 [shape = 'u8[262144]{0}', space=vmem, size = 0x40000, scoped, tag = 'output window, operand 0']
    #allocation3 [shape = 's32[2]{0}', space=sflag, size = 0x8, scoped, tag = 'scoped memory for pallas_feedforward.1']
    %10 = vsyncpa [#allocation3], 0
    %s11 = scalar_lea.sflag [#allocation3], 1
    %12 = vsyncpa %s11, 0
    loop: start=0, step=1, limit=4
    $region2: #{pallas_feedforward.1} parent=1 // loop_pre_header
      _
    $region3: #{pallas_feedforward.1} parent=1 // loop_header
      %s14 = sphi 0, %s18
      %p15 = scmp.ge.s32.totalorder %s14, 4
      %s24 = sphi 0, %s26
      %s27 = sphi 0, %s24
      %s28 = sphi 0, %s27
      %s44 = sphi 0, %s28
      %s48 = sphi 0, %s48
      %s50 = sphi 0, %s48
      %s51 = sphi 0, %s50
      %s65 = sphi 0, %s51
      %s69 = sphi 0, %s69
      %s71 = sphi 0, %s69
      %s72 = sphi 0, %s71
      %s86 = sphi 0, %s72
      %s90 = sphi 0, %s90
      %s92 = sphi 0, %s90
      %s93 = sphi 0, %s92
      %s107 = sphi 0, %s93
      %s111 = sphi 0, %s111
      %s113 = sphi 0, %s111
      %s114 = sphi 0, %s113
      %s128 = sphi 0, %s114
      %s134 = sphi 0, %s136
      %s137 = sphi 0, %s134
      %s138 = sphi 0, %s137
      %s154 = sphi 0, %s138
    $region4: #{pallas_feedforward.1} parent=1 // loop_header_branch
      %17 = sbr.rel (%p15) target = $region8
    $region5: #{pallas_feedforward.1} parent=1 // loop_body
      %s19 = ssub.s32 %s14, 1
      %s20 = ssub.s32 %s14, 2
      %s21 = sadd.s32 %s14, 1
      %s22 = ssub.s32 %s14, %s21
      %p23 = scmp.eq.s32.totalorder %s22, 0
      %s25 = sadd.s32 %s24, 1
      %s26 = scalar_select %p23, %s24, %s25
      %p29 = pneg %p23
      %p30 = scmp.eq.s32.totalorder %s14, 1
      %p31 = por %p29, %p30
      %p32 = scmp.ne.s32.totalorder %s24, %s27
      %p33 = scmp.eq.s32.totalorder %s14, 0
      %p34 = por %p32, %p33
      %p35 = scmp.ne.s32.totalorder %s24, %s27
      %p36 = scmp.eq.s32.totalorder %s19, 1
      %p37 = por %p35, %p36
      %p38 = scmp.ne.s32.totalorder %s27, %s28
      %p39 = scmp.eq.s32.totalorder %s19, 0
      %p40 = por %p38, %p39
      %p41 = scmp.ne.s32.totalorder %s27, %s28
      %p42 = scmp.eq.s32.totalorder %s20, 1
      %p43 = por %p41, %p42
      %p45 = scmp.ne.s32.totalorder %s28, %s44
      %p46 = scmp.eq.s32.totalorder %s20, 0
      %p47 = por %p45, %p46
      %s49 = sadd.s32 %s48, 1
      %p52 = scmp.eq.s32.totalorder %s14, 1
      %p53 = scmp.ne.s32.totalorder %s48, %s50
      %p54 = scmp.eq.s32.totalorder %s14, 0
      %p55 = por %p53, %p54
      %p56 = scmp.ne.s32.totalorder %s48, %s50
      %p57 = scmp.eq.s32.totalorder %s19, 1
      %p58 = por %p56, %p57
      %p59 = scmp.ne.s32.totalorder %s50, %s51
      %p60 = scmp.eq.s32.totalorder %s19, 0
      %p61 = por %p59, %p60
      %p62 = scmp.ne.s32.totalorder %s50, %s51
      %p63 = scmp.eq.s32.totalorder %s20, 1
      %p64 = por %p62, %p63
      %p66 = scmp.ne.s32.totalorder %s51, %s65
      %p67 = scmp.eq.s32.totalorder %s20, 0
      %p68 = por %p66, %p67
      %s70 = sadd.s32 %s69, 1
      %p73 = scmp.eq.s32.totalorder %s14, 1
      %p74 = scmp.ne.s32.totalorder %s69, %s71
      %p75 = scmp.eq.s32.totalorder %s14, 0
      %p76 = por %p74, %p75
      %p77 = scmp.ne.s32.totalorder %s69, %s71
      %p78 = scmp.eq.s32.totalorder %s19, 1
      %p79 = por %p77, %p78
      %p80 = scmp.ne.s32.totalorder %s71, %s72
      %p81 = scmp.eq.s32.totalorder %s19, 0
      %p82 = por %p80, %p81
      %p83 = scmp.ne.s32.totalorder %s71, %s72
      %p84 = scmp.eq.s32.totalorder %s20, 1
      %p85 = por %p83, %p84
      %p87 = scmp.ne.s32.totalorder %s72, %s86
      %p88 = scmp.eq.s32.totalorder %s20, 0
      %p89 = por %p87, %p88
      %s91 = sadd.s32 %s90, 1
      %p94 = scmp.eq.s32.totalorder %s14, 1
      %p95 = scmp.ne.s32.totalorder %s90, %s92
      %p96 = scmp.eq.s32.totalorder %s14, 0
      %p97 = por %p95, %p96
      %p98 = scmp.ne.s32.totalorder %s90, %s92
      %p99 = scmp.eq.s32.totalorder %s19, 1
      %p100 = por %p98, %p99
      %p101 = scmp.ne.s32.totalorder %s92, %s93
      %p102 = scmp.eq.s32.totalorder %s19, 0
      %p103 = por %p101, %p102
      %p104 = scmp.ne.s32.totalorder %s92, %s93
      %p105 = scmp.eq.s32.totalorder %s20, 1
      %p106 = por %p104, %p105
      %p108 = scmp.ne.s32.totalorder %s93, %s107
      %p109 = scmp.eq.s32.totalorder %s20, 0
      %p110 = por %p108, %p109
      %s112 = sadd.s32 %s111, 1
      %p115 = scmp.eq.s32.totalorder %s14, 1
      %p116 = scmp.ne.s32.totalorder %s111, %s113
      %p117 = scmp.eq.s32.totalorder %s14, 0
      %p118 = por %p116, %p117
      %p119 = scmp.ne.s32.totalorder %s111, %s113
      %p120 = scmp.eq.s32.totalorder %s19, 1
      %p121 = por %p119, %p120
      %p122 = scmp.ne.s32.totalorder %s113, %s114
      %p123 = scmp.eq.s32.totalorder %s19, 0
      %p124 = por %p122, %p123
      %p125 = scmp.ne.s32.totalorder %s113, %s114
      %p126 = scmp.eq.s32.totalorder %s20, 1
      %p127 = por %p125, %p126
      %p129 = scmp.ne.s32.totalorder %s114, %s128
      %p130 = scmp.eq.s32.totalorder %s20, 0
      %p131 = por %p129, %p130
      %s132 = ssub.s32 %s14, %s21
      %p133 = scmp.eq.s32.totalorder %s132, 0
      %s135 = sadd.s32 %s134, 1
      %s136 = scalar_select %p133, %s134, %s135
      %p139 = pneg %p133
      %p140 = scmp.eq.s32.totalorder %s14, 1
      %p141 = por %p139, %p140
      %p142 = scmp.ne.s32.totalorder %s134, %s137
      %p143 = scmp.eq.s32.totalorder %s14, 0
      %p144 = por %p142, %p143
      %p145 = scmp.ne.s32.totalorder %s134, %s137
      %p146 = scmp.eq.s32.totalorder %s19, 1
      %p147 = por %p145, %p146
      %p148 = scmp.ne.s32.totalorder %s137, %s138
      %p149 = scmp.eq.s32.totalorder %s19, 0
      %p150 = por %p148, %p149
      %p151 = scmp.ne.s32.totalorder %s137, %s138
      %p152 = scmp.eq.s32.totalorder %s20, 1
      %p153 = por %p151, %p152
      %p155 = scmp.ne.s32.totalorder %s138, %s154
      %p156 = scmp.eq.s32.totalorder %s20, 0
      %p157 = por %p155, %p156
      %p158 = scmp.le.s32.totalorder 1, %s14
      %p159 = scmp.lt.s32.totalorder %s14, 3
      %p160 = pnand %p158, %p159
      %p161 = pneg %p160
      // Predicated region
      $region9: #{pallas_feedforward.1} parent=5 // pred_check
        _
      $region10: #{pallas_feedforward.1} parent=5 // pred_check_branch
        %163 = sbr.rel (%p160) target = $region12
      $region11: #{pallas_feedforward.1} parent=5 // pred_region
        %s164 = ssub.s32 %s14, 1
        // Predicated region
        $region13: #{pallas_feedforward.1} parent=11 // pred_check
          %p165 = pneg %p61
        $region14: #{pallas_feedforward.1} parent=11 // pred_check_branch
          %167 = sbr.rel (%p165) target = $region16
        $region15: #{pallas_feedforward.1} parent=11 // pred_region
          _
        $region16: #{pallas_feedforward.1} parent=11 // pred_fallthru
          _
        // Predicated region
        $region17: #{pallas_feedforward.1} parent=11 // pred_check
          %p168 = pneg %p82
        $region18: #{pallas_feedforward.1} parent=11 // pred_check_branch
          %170 = sbr.rel (%p168) target = $region20
        $region19: #{pallas_feedforward.1} parent=11 // pred_region
          _
        $region20: #{pallas_feedforward.1} parent=11 // pred_fallthru
          _
        // Predicated region
        $region21: #{pallas_feedforward.1} parent=11 // pred_check
          %p171 = pneg %p103
        $region22: #{pallas_feedforward.1} parent=11 // pred_check_branch
          %173 = sbr.rel (%p171) target = $region24
        $region23: #{pallas_feedforward.1} parent=11 // pred_region
          _
        $region24: #{pallas_feedforward.1} parent=11 // pred_fallthru
          _
        // Predicated region
        $region25: #{pallas_feedforward.1} parent=11 // pred_check
          %p174 = pneg %p124
        $region26: #{pallas_feedforward.1} parent=11 // pred_check_branch
          %176 = sbr.rel (%p174) target = $region28
        $region27: #{pallas_feedforward.1} parent=11 // pred_region
          _
        $region28: #{pallas_feedforward.1} parent=11 // pred_fallthru
          _
      $region12: #{pallas_feedforward.1} parent=5 // pred_fallthru
        _
      %p177 = scmp.lt.s32.totalorder %s14, 2
      // Predicated region
      $region29: #{pallas_feedforward.1} parent=5 // pred_check
        %p178 = pneg %p177
      $region30: #{pallas_feedforward.1} parent=5 // pred_check_branch
        %180 = sbr.rel (%p178) target = $region32
      $region31: #{pallas_feedforward.1} parent=5 // pred_region
        // Predicated region
        $region33: #{pallas_feedforward.1} parent=31 // pred_check
          %p181 = pneg %p34
        $region34: #{pallas_feedforward.1} parent=31 // pred_check_branch
          %183 = sbr.rel (%p181) target = $region36
        $region35: #{pallas_feedforward.1} parent=31 // pred_region
          %s184 = smul.u32 32, %s14
          %p185 = scmp.lt.s32.totalorder %s184, 63
          %s186 = scalar_select %p185, %s184, 63
          %s187 = smul.addr %s186, 8
          %s188 = scalar_lea.vmem %s0, %s187
          %s189 = smul.u32 32, %s14
        $region36: #{pallas_feedforward.1} parent=31 // pred_fallthru
          _
      $region32: #{pallas_feedforward.1} parent=5 // pred_fallthru
        _
      %p190 = scmp.le.s32.totalorder 1, %s14
      %p191 = scmp.lt.s32.totalorder %s14, 3
      %p192 = pnand %p190, %p191
      %p193 = pneg %p192
      // Predicated region
      $region37: #{pallas_feedforward.1} parent=5 // pred_check
        _
      $region38: #{pallas_feedforward.1} parent=5 // pred_check_branch
        %195 = sbr.rel (%p192) target = $region40
      $region39: #{pallas_feedforward.1} parent=5 // pred_region
        %s196 = ssub.s32 %s14, 1
        %s197 = smul.u32 32, %s19
        %p198 = scmp.lt.s32.totalorder %s197, 63
        %s199 = scalar_select %p198, %s197, 63
        %s200 = smul.addr %s199, 8
        %s201 = scalar_lea.vmem %s0, %s200
        %p202 = pneg %p40
        %p203 = pneg %p37
        %p204 = pneg %p61
        %p205 = pneg %p58
        %p206 = pneg %p82
        %p207 = pneg %p79
        %p208 = pneg %p103
        %p209 = pneg %p100
        %p210 = pneg %p124
        %p211 = pneg %p121
        %p212 = pneg %p150
        %p213 = pneg %p147
        %s214 = sand.u32 %s137, 1
        %s215 = scalar_lea.sflag [#allocation3], %s214
        %s216 = sand.u32 %s137, 1
        %s217 = smul.addr %s216, 256
        %s218 = scalar_lea.vmem [#allocation2], %s217
        %s219 = smul.u32 32, %s19
        %p220 = scmp.lt.s32.totalorder %s219, 63
        %s221 = scalar_select %p220, %s219, 63
        %s222 = smul.addr %s221, 8
        %s223 = scalar_lea.vmem %s0, %s222
        %s224 = smul.u32 32, %s19
        %s225 = smul.u32 32, %s19
        %v226 = vld [vmem:[%s223] sm:$0xff]
        %v227 = vld [vmem:[%s223 + $0x8] sm:$0xff]
        %v228 = vld [vmem:[%s223 + $0x10] sm:$0xff]
        %v229 = vld [vmem:[%s223 + $0x18] sm:$0xff]
        %v230 = vld [vmem:[%s223 + $0x20] sm:$0xff]
        %v231 = vld [vmem:[%s223 + $0x28] sm:$0xff]
        %v232 = vld [vmem:[%s223 + $0x30] sm:$0xff]
        %v233 = vld [vmem:[%s223 + $0x38] sm:$0xff]
        %v234 = vld [vmem:[%s223 + $0x40] sm:$0xff]
        %v235 = vld [vmem:[%s223 + $0x48] sm:$0xff]
        %v236 = vld [vmem:[%s223 + $0x50] sm:$0xff]
        %v237 = vld [vmem:[%s223 + $0x58] sm:$0xff]
        %v238 = vld [vmem:[%s223 + $0x60] sm:$0xff]
        %v239 = vld [vmem:[%s223 + $0x68] sm:$0xff]
        %v240 = vld [vmem:[%s223 + $0x70] sm:$0xff]
        %v241 = vld [vmem:[%s223 + $0x78] sm:$0xff]
        %v242 = vld [vmem:[%s223 + $0x80] sm:$0xff]
        %v243 = vld [vmem:[%s223 + $0x88] sm:$0xff]
        %v244 = vld [vmem:[%s223 + $0x90] sm:$0xff]
        %v245 = vld [vmem:[%s223 + $0x98] sm:$0xff]
        %v246 = vld [vmem:[%s223 + $0xa0] sm:$0xff]
        %v247 = vld [vmem:[%s223 + $0xa8] sm:$0xff]
        %v248 = vld [vmem:[%s223 + $0xb0] sm:$0xff]
        %v249 = vld [vmem:[%s223 + $0xb8] sm:$0xff]
        %v250 = vld [vmem:[%s223 + $0xc0] sm:$0xff]
        %v251 = vld [vmem:[%s223 + $0xc8] sm:$0xff]
        %v252 = vld [vmem:[%s223 + $0xd0] sm:$0xff]
        %v253 = vld [vmem:[%s223 + $0xd8] sm:$0xff]
        %v254 = vld [vmem:[%s223 + $0xe0] sm:$0xff]
        %v255 = vld [vmem:[%s223 + $0xe8] sm:$0xff]
        %v256 = vld [vmem:[%s223 + $0xf0] sm:$0xff]
        %v257 = vld [vmem:[%s223 + $0xf8] sm:$0xff]
        %v258 = vpack.c.bf16 %v227, %v226
        %v259 = vpack.c.bf16 %v229, %v228
        %v260 = vpack.c.bf16 %v231, %v230
        %v261 = vpack.c.bf16 %v233, %v232
        %v262 = vpack.c.bf16 %v235, %v234
        %v263 = vpack.c.bf16 %v237, %v236
        %v264 = vpack.c.bf16 %v239, %v238
        %v265 = vpack.c.bf16 %v241, %v240
        %v266 = vpack.c.bf16 %v243, %v242
        %v267 = vpack.c.bf16 %v245, %v244
        %v268 = vpack.c.bf16 %v247, %v246
        %v269 = vpack.c.bf16 %v249, %v248
        %v270 = vpack.c.bf16 %v251, %v250
        %v271 = vpack.c.bf16 %v253, %v252
        %v272 = vpack.c.bf16 %v255, %v254
        %v273 = vpack.c.bf16 %v257, %v256
        %v274 = vld [vmem:[%s1] sm:$0xff]
        %v275 = vld [vmem:[%s1 + $0x8] sm:$0xff]
        %v276 = vld [vmem:[%s1 + $0x10] sm:$0xff]
        %v277 = vld [vmem:[%s1 + $0x18] sm:$0xff]
        %v278 = vld [vmem:[%s1 + $0x20] sm:$0xff]
        %v279 = vld [vmem:[%s1 + $0x28] sm:$0xff]
        %v280 = vld [vmem:[%s1 + $0x30] sm:$0xff]
        %v281 = vld [vmem:[%s1 + $0x38] sm:$0xff]
        %v282 = vld [vmem:[%s1 + $0x40] sm:$0xff]
        %v283 = vld [vmem:[%s1 + $0x48] sm:$0xff]
        %v284 = vld [vmem:[%s1 + $0x50] sm:$0xff]
        %v285 = vld [vmem:[%s1 + $0x58] sm:$0xff]
        %v286 = vld [vmem:[%s1 + $0x60] sm:$0xff]
        %v287 = vld [vmem:[%s1 + $0x68] sm:$0xff]
        %v288 = vld [vmem:[%s1 + $0x70] sm:$0xff]
        %v289 = vld [vmem:[%s1 + $0x78] sm:$0xff]
        %v290 = vld [vmem:[%s1 + $0x80] sm:$0xff]
        %v291 = vld [vmem:[%s1 + $0x88] sm:$0xff]
        %v292 = vld [vmem:[%s1 + $0x90] sm:$0xff]
        %v293 = vld [vmem:[%s1 + $0x98] sm:$0xff]
        %v294 = vld [vmem:[%s1 + $0xa0] sm:$0xff]
        %v295 = vld [vmem:[%s1 + $0xa8] sm:$0xff]
        %v296 = vld [vmem:[%s1 + $0xb0] sm:$0xff]
        %v297 = vld [vmem:[%s1 + $0xb8] sm:$0xff]
        %v298 = vld [vmem:[%s1 + $0xc0] sm:$0xff]
        %v299 = vld [vmem:[%s1 + $0xc8] sm:$0xff]
        %v300 = vld [vmem:[%s1 + $0xd0] sm:$0xff]
        %v301 = vld [vmem:[%s1 + $0xd8] sm:$0xff]
        %v302 = vld [vmem:[%s1 + $0xe0] sm:$0xff]
        %v303 = vld [vmem:[%s1 + $0xe8] sm:$0xff]
        %v304 = vld [vmem:[%s1 + $0xf0] sm:$0xff]
        %v305 = vld [vmem:[%s1 + $0xf8] sm:$0xff]
        %v306 = vld [vmem:[%s2] sm:$0xf]
        %v308 = vperm.slane %v306, 0
        %v309 = vperm.slane %v306, 1
        %v310 = vperm.slane %v306, 2
        %v311 = vperm.slane %v306, 3
        %v348 = vunpack.c.l.b16 %v274
        %v349 = vunpack.c.h.b16 %v274
        %v350 = vunpack.c.l.b16 %v275
        %v351 = vunpack.c.h.b16 %v275
        %v352 = vunpack.c.l.b16 %v276
        %v353 = vunpack.c.h.b16 %v276
        %v354 = vunpack.c.l.b16 %v277
        %v355 = vunpack.c.h.b16 %v277
        %v356 = vunpack.c.l.b16 %v278
        %v357 = vunpack.c.h.b16 %v278
        %v358 = vunpack.c.l.b16 %v279
        %v359 = vunpack.c.h.b16 %v279
        %v360 = vunpack.c.l.b16 %v280
        %v361 = vunpack.c.h.b16 %v280
        %v362 = vunpack.c.l.b16 %v281
        %v363 = vunpack.c.h.b16 %v281
        %v364 = vunpack.c.l.b16 %v282
        %v365 = vunpack.c.h.b16 %v282
        %v366 = vunpack.c.l.b16 %v283
        %v367 = vunpack.c.h.b16 %v283
        %v368 = vunpack.c.l.b16 %v284
        %v369 = vunpack.c.h.b16 %v284
        %v370 = vunpack.c.l.b16 %v285
        %v371 = vunpack.c.h.b16 %v285
        %v372 = vunpack.c.l.b16 %v286
        %v373 = vunpack.c.h.b16 %v286
        %v374 = vunpack.c.l.b16 %v287
        %v375 = vunpack.c.h.b16 %v287
        %v376 = vunpack.c.l.b16 %v288
        %v377 = vunpack.c.h.b16 %v288
        %v378 = vunpack.c.l.b16 %v289
        %v379 = vunpack.c.h.b16 %v289
        %v380 = vunpack.c.l.b16 %v290
        %v381 = vunpack.c.h.b16 %v290
        %v382 = vunpack.c.l.b16 %v291
        %v383 = vunpack.c.h.b16 %v291
        %v384 = vunpack.c.l.b16 %v292
        %v385 = vunpack.c.h.b16 %v292
        %v386 = vunpack.c.l.b16 %v293
        %v387 = vunpack.c.h.b16 %v293
        %v388 = vunpack.c.l.b16 %v294
        %v389 = vunpack.c.h.b16 %v294
        %v390 = vunpack.c.l.b16 %v295
        %v391 = vunpack.c.h.b16 %v295
        %v392 = vunpack.c.l.b16 %v296
        %v393 = vunpack.c.h.b16 %v296
        %v394 = vunpack.c.l.b16 %v297
        %v395 = vunpack.c.h.b16 %v297
        %v396 = vunpack.c.l.b16 %v298
        %v397 = vunpack.c.h.b16 %v298
        %v398 = vunpack.c.l.b16 %v299
        %v399 = vunpack.c.h.b16 %v299
        %v400 = vunpack.c.l.b16 %v300
        %v401 = vunpack.c.h.b16 %v300
        %v402 = vunpack.c.l.b16 %v301
        %v403 = vunpack.c.h.b16 %v301
        %v404 = vunpack.c.l.b16 %v302
        %v405 = vunpack.c.h.b16 %v302
        %v406 = vunpack.c.l.b16 %v303
        %v407 = vunpack.c.h.b16 %v303
        %v408 = vunpack.c.l.b16 %v304
        %v409 = vunpack.c.h.b16 %v304
        %v410 = vunpack.c.l.b16 %v305
        %v411 = vunpack.c.h.b16 %v305
        %v412 = vpack.c.b16 %v352, %v348
        %v413 = vpack.c.b16 %v353, %v349
        %v414 = vpack.c.b16 %v354, %v350
        %v415 = vpack.c.b16 %v355, %v351
        %v416 = vpack.c.b16 %v360, %v356
        %v417 = vpack.c.b16 %v361, %v357
        %v418 = vpack.c.b16 %v362, %v358
        %v419 = vpack.c.b16 %v363, %v359
        %v420 = vpack.c.b16 %v368, %v364
        %v421 = vpack.c.b16 %v369, %v365
        %v422 = vpack.c.b16 %v370, %v366
        %v423 = vpack.c.b16 %v371, %v367
        %v424 = vpack.c.b16 %v376, %v372
        %v425 = vpack.c.b16 %v377, %v373
        %v426 = vpack.c.b16 %v378, %v374
        %v427 = vpack.c.b16 %v379, %v375
        %v428 = vpack.c.b16 %v384, %v380
        %v429 = vpack.c.b16 %v385, %v381
        %v430 = vpack.c.b16 %v386, %v382
        %v431 = vpack.c.b16 %v387, %v383
        %v432 = vpack.c.b16 %v392, %v388
        %v433 = vpack.c.b16 %v393, %v389
        %v434 = vpack.c.b16 %v394, %v390
        %v435 = vpack.c.b16 %v395, %v391
        %v436 = vpack.c.b16 %v400, %v396
        %v437 = vpack.c.b16 %v401, %v397
        %v438 = vpack.c.b16 %v402, %v398
        %v439 = vpack.c.b16 %v403, %v399
        %v440 = vpack.c.b16 %v408, %v404
        %v441 = vpack.c.b16 %v409, %v405
        %v442 = vpack.c.b16 %v410, %v406
        %v443 = vpack.c.b16 %v411, %v407
        %476 = vmatpush.bf16.msra.mxu0 %v440
        %477 = vmatpush.bf16.msra.mxu0 %v436
        %478 = vmatpush.bf16.msra.mxu0 %v432
        %479 = vmatpush.bf16.msra.mxu0 %v428
        %480 = vmatpush.bf16.msra.mxu0 %v424
        %481 = vmatpush.bf16.msra.mxu0 %v420
        %482 = vmatpush.bf16.msra.mxu0 %v416
        %483 = vmatpush.bf16.msra.mxu0 %v412
        %484 = vmatmul.bf16.gmra.mxu0 %v258
        %v485 = vpop.f32.mrf.mxu0
        %v486 = vadd.f32 %v308, %v485
        %v487 = vpop.f32.mrf.mxu0
        %v488 = vadd.f32 %v308, %v487
        %489 = vmatmul.bf16.gmra.mxu0 %v259
        %v490 = vpop.f32.mrf.mxu0
        %v491 = vadd.f32 %v308, %v490
        %v492 = vpop.f32.mrf.mxu0
        %v493 = vadd.f32 %v308, %v492
        %494 = vmatmul.bf16.gmra.mxu0 %v260
        %v495 = vpop.f32.mrf.mxu0
        %v496 = vadd.f32 %v308, %v495
        %v497 = vpop.f32.mrf.mxu0
        %v498 = vadd.f32 %v308, %v497
        %499 = vmatmul.bf16.gmra.mxu0 %v261
        %v500 = vpop.f32.mrf.mxu0
        %v501 = vadd.f32 %v308, %v500
        %v502 = vpop.f32.mrf.mxu0
        %v503 = vadd.f32 %v308, %v502
        %504 = vmatmul.bf16.gmra.mxu0 %v262
        %v505 = vpop.f32.mrf.mxu0
        %v506 = vadd.f32 %v308, %v505
        %v507 = vpop.f32.mrf.mxu0
        %v508 = vadd.f32 %v308, %v507
        %509 = vmatmul.bf16.gmra.mxu0 %v263
        %v510 = vpop.f32.mrf.mxu0
        %v511 = vadd.f32 %v308, %v510
        %v512 = vpop.f32.mrf.mxu0
        %v513 = vadd.f32 %v308, %v512
        %514 = vmatmul.bf16.gmra.mxu0 %v264
        %v515 = vpop.f32.mrf.mxu0
        %v516 = vadd.f32 %v308, %v515
        %v517 = vpop.f32.mrf.mxu0
        %v518 = vadd.f32 %v308, %v517
        %519 = vmatmul.bf16.gmra.mxu0 %v265
        %v520 = vpop.f32.mrf.mxu0
        %v521 = vadd.f32 %v308, %v520
        %v522 = vpop.f32.mrf.mxu0
        %v523 = vadd.f32 %v308, %v522
        %524 = vmatmul.bf16.gmra.mxu0 %v266
        %v525 = vpop.f32.mrf.mxu0
        %v526 = vadd.f32 %v308, %v525
        %v527 = vpop.f32.mrf.mxu0
        %v528 = vadd.f32 %v308, %v527
        %529 = vmatmul.bf16.gmra.mxu0 %v267
        %v530 = vpop.f32.mrf.mxu0
        %v531 = vadd.f32 %v308, %v530
        %v532 = vpop.f32.mrf.mxu0
        %v533 = vadd.f32 %v308, %v532
        %534 = vmatmul.bf16.gmra.mxu0 %v268
        %v535 = vpop.f32.mrf.mxu0
        %v536 = vadd.f32 %v308, %v535
        %v537 = vpop.f32.mrf.mxu0
        %v538 = vadd.f32 %v308, %v537
        %539 = vmatmul.bf16.gmra.mxu0 %v269
        %v540 = vpop.f32.mrf.mxu0
        %v541 = vadd.f32 %v308, %v540
        %v542 = vpop.f32.mrf.mxu0
        %v543 = vadd.f32 %v308, %v542
        %544 = vmatmul.bf16.gmra.mxu0 %v270
        %v545 = vpop.f32.mrf.mxu0
        %v546 = vadd.f32 %v308, %v545
        %v547 = vpop.f32.mrf.mxu0
        %v548 = vadd.f32 %v308, %v547
        %549 = vmatmul.bf16.gmra.mxu0 %v271
        %v550 = vpop.f32.mrf.mxu0
        %v551 = vadd.f32 %v308, %v550
        %v552 = vpop.f32.mrf.mxu0
        %v553 = vadd.f32 %v308, %v552
        %554 = vmatmul.bf16.gmra.mxu0 %v272
        %v555 = vpop.f32.mrf.mxu0
        %v556 = vadd.f32 %v308, %v555
        %v557 = vpop.f32.mrf.mxu0
        %v558 = vadd.f32 %v308, %v557
        %559 = vmatmul.bf16.gmra.mxu0 %v273
        %v560 = vpop.f32.mrf.mxu0
        %v561 = vadd.f32 %v308, %v560
        %v562 = vpop.f32.mrf.mxu0
        %v563 = vadd.f32 %v308, %v562
        %564 = vdwg.mxu0
        %565 = vmatpush.bf16.msra.mxu0 %v441
        %566 = vmatpush.bf16.msra.mxu0 %v437
        %567 = vmatpush.bf16.msra.mxu0 %v433
        %568 = vmatpush.bf16.msra.mxu0 %v429
        %569 = vmatpush.bf16.msra.mxu0 %v425
        %570 = vmatpush.bf16.msra.mxu0 %v421
        %571 = vmatpush.bf16.msra.mxu0 %v417
        %572 = vmatpush.bf16.msra.mxu0 %v413
        %573 = vmatmul.bf16.gmra.mxu0 %v258
        %v574 = vpop.f32.mrf.mxu0
        %v575 = vadd.f32 %v309, %v574
        %v576 = vpop.f32.mrf.mxu0
        %v577 = vadd.f32 %v309, %v576
        %578 = vmatmul.bf16.gmra.mxu0 %v259
        %v579 = vpop.f32.mrf.mxu0
        %v580 = vadd.f32 %v309, %v579
        %v581 = vpop.f32.mrf.mxu0
        %v582 = vadd.f32 %v309, %v581
        %583 = vmatmul.bf16.gmra.mxu0 %v260
        %v584 = vpop.f32.mrf.mxu0
        %v585 = vadd.f32 %v309, %v584
        %v586 = vpop.f32.mrf.mxu0
        %v587 = vadd.f32 %v309, %v586
        %588 = vmatmul.bf16.gmra.mxu0 %v261
        %v589 = vpop.f32.mrf.mxu0
        %v590 = vadd.f32 %v309, %v589
        %v591 = vpop.f32.mrf.mxu0
        %v592 = vadd.f32 %v309, %v591
        %593 = vmatmul.bf16.gmra.mxu0 %v262
        %v594 = vpop.f32.mrf.mxu0
        %v595 = vadd.f32 %v309, %v594
        %v596 = vpop.f32.mrf.mxu0
        %v597 = vadd.f32 %v309, %v596
        %598 = vmatmul.bf16.gmra.mxu0 %v263
        %v599 = vpop.f32.mrf.mxu0
        %v600 = vadd.f32 %v309, %v599
        %v601 = vpop.f32.mrf.mxu0
        %v602 = vadd.f32 %v309, %v601
        %603 = vmatmul.bf16.gmra.mxu0 %v264
        %v604 = vpop.f32.mrf.mxu0
        %v605 = vadd.f32 %v309, %v604
        %v606 = vpop.f32.mrf.mxu0
        %v607 = vadd.f32 %v309, %v606
        %608 = vmatmul.bf16.gmra.mxu0 %v265
        %v609 = vpop.f32.mrf.mxu0
        %v610 = vadd.f32 %v309, %v609
        %v611 = vpop.f32.mrf.mxu0
        %v612 = vadd.f32 %v309, %v611
        %613 = vmatmul.bf16.gmra.mxu0 %v266
        %v614 = vpop.f32.mrf.mxu0
        %v615 = vadd.f32 %v309, %v614
        %v616 = vpop.f32.mrf.mxu0
        %v617 = vadd.f32 %v309, %v616
        %618 = vmatmul.bf16.gmra.mxu0 %v267
        %v619 = vpop.f32.mrf.mxu0
        %v620 = vadd.f32 %v309, %v619
        %v621 = vpop.f32.mrf.mxu0
        %v622 = vadd.f32 %v309, %v621
        %623 = vmatmul.bf16.gmra.mxu0 %v268
        %v624 = vpop.f32.mrf.mxu0
        %v625 = vadd.f32 %v309, %v624
        %v626 = vpop.f32.mrf.mxu0
        %v627 = vadd.f32 %v309, %v626
        %628 = vmatmul.bf16.gmra.mxu0 %v269
        %v629 = vpop.f32.mrf.mxu0
        %v630 = vadd.f32 %v309, %v629
        %v631 = vpop.f32.mrf.mxu0
        %v632 = vadd.f32 %v309, %v631
        %633 = vmatmul.bf16.gmra.mxu0 %v270
        %v634 = vpop.f32.mrf.mxu0
        %v635 = vadd.f32 %v309, %v634
        %v636 = vpop.f32.mrf.mxu0
        %v637 = vadd.f32 %v309, %v636
        %638 = vmatmul.bf16.gmra.mxu0 %v271
        %v639 = vpop.f32.mrf.mxu0
        %v640 = vadd.f32 %v309, %v639
        %v641 = vpop.f32.mrf.mxu0
        %v642 = vadd.f32 %v309, %v641
        %643 = vmatmul.bf16.gmra.mxu0 %v272
        %v644 = vpop.f32.mrf.mxu0
        %v645 = vadd.f32 %v309, %v644
        %v646 = vpop.f32.mrf.mxu0
        %v647 = vadd.f32 %v309, %v646
        %648 = vmatmul.bf16.gmra.mxu0 %v273
        %v649 = vpop.f32.mrf.mxu0
        %v650 = vadd.f32 %v309, %v649
        %v651 = vpop.f32.mrf.mxu0
        %v652 = vadd.f32 %v309, %v651
        %653 = vdwg.mxu0
        %654 = vmatpush.bf16.msra.mxu0 %v442
        %655 = vmatpush.bf16.msra.mxu0 %v438
        %656 = vmatpush.bf16.msra.mxu0 %v434
        %657 = vmatpush.bf16.msra.mxu0 %v430
        %658 = vmatpush.bf16.msra.mxu0 %v426
        %659 = vmatpush.bf16.msra.mxu0 %v422
        %660 = vmatpush.bf16.msra.mxu0 %v418
        %661 = vmatpush.bf16.msra.mxu0 %v414
        %662 = vmatmul.bf16.gmra.mxu0 %v258
        %v663 = vpop.f32.mrf.mxu0
        %v664 = vadd.f32 %v310, %v663
        %v665 = vpop.f32.mrf.mxu0
        %v666 = vadd.f32 %v310, %v665
        %667 = vmatmul.bf16.gmra.mxu0 %v259
        %v668 = vpop.f32.mrf.mxu0
        %v669 = vadd.f32 %v310, %v668
        %v670 = vpop.f32.mrf.mxu0
        %v671 = vadd.f32 %v310, %v670
        %672 = vmatmul.bf16.gmra.mxu0 %v260
        %v673 = vpop.f32.mrf.mxu0
        %v674 = vadd.f32 %v310, %v673
        %v675 = vpop.f32.mrf.mxu0
        %v676 = vadd.f32 %v310, %v675
        %677 = vmatmul.bf16.gmra.mxu0 %v261
        %v678 = vpop.f32.mrf.mxu0
        %v679 = vadd.f32 %v310, %v678
        %v680 = vpop.f32.mrf.mxu0
        %v681 = vadd.f32 %v310, %v680
        %682 = vmatmul.bf16.gmra.mxu0 %v262
        %v683 = vpop.f32.mrf.mxu0
        %v684 = vadd.f32 %v310, %v683
        %v685 = vpop.f32.mrf.mxu0
        %v686 = vadd.f32 %v310, %v685
        %687 = vmatmul.bf16.gmra.mxu0 %v263
        %v688 = vpop.f32.mrf.mxu0
        %v689 = vadd.f32 %v310, %v688
        %v690 = vpop.f32.mrf.mxu0
        %v691 = vadd.f32 %v310, %v690
        %692 = vmatmul.bf16.gmra.mxu0 %v264
        %v693 = vpop.f32.mrf.mxu0
        %v694 = vadd.f32 %v310, %v693
        %v695 = vpop.f32.mrf.mxu0
        %v696 = vadd.f32 %v310, %v695
        %697 = vmatmul.bf16.gmra.mxu0 %v265
        %v698 = vpop.f32.mrf.mxu0
        %v699 = vadd.f32 %v310, %v698
        %v700 = vpop.f32.mrf.mxu0
        %v701 = vadd.f32 %v310, %v700
        %702 = vmatmul.bf16.gmra.mxu0 %v266
        %v703 = vpop.f32.mrf.mxu0
        %v704 = vadd.f32 %v310, %v703
        %v705 = vpop.f32.mrf.mxu0
        %v706 = vadd.f32 %v310, %v705
        %707 = vmatmul.bf16.gmra.mxu0 %v267
        %v708 = vpop.f32.mrf.mxu0
        %v709 = vadd.f32 %v310, %v708
        %v710 = vpop.f32.mrf.mxu0
        %v711 = vadd.f32 %v310, %v710
        %712 = vmatmul.bf16.gmra.mxu0 %v268
        %v713 = vpop.f32.mrf.mxu0
        %v714 = vadd.f32 %v310, %v713
        %v715 = vpop.f32.mrf.mxu0
        %v716 = vadd.f32 %v310, %v715
        %717 = vmatmul.bf16.gmra.mxu0 %v269
        %v718 = vpop.f32.mrf.mxu0
        %v719 = vadd.f32 %v310, %v718
        %v720 = vpop.f32.mrf.mxu0
        %v721 = vadd.f32 %v310, %v720
        %722 = vmatmul.bf16.gmra.mxu0 %v270
        %v723 = vpop.f32.mrf.mxu0
        %v724 = vadd.f32 %v310, %v723
        %v725 = vpop.f32.mrf.mxu0
        %v726 = vadd.f32 %v310, %v725
        %727 = vmatmul.bf16.gmra.mxu0 %v271
        %v728 = vpop.f32.mrf.mxu0
        %v729 = vadd.f32 %v310, %v728
        %v730 = vpop.f32.mrf.mxu0
        %v731 = vadd.f32 %v310, %v730
        %732 = vmatmul.bf16.gmra.mxu0 %v272
        %v733 = vpop.f32.mrf.mxu0
        %v734 = vadd.f32 %v310, %v733
        %v735 = vpop.f32.mrf.mxu0
        %v736 = vadd.f32 %v310, %v735
        %737 = vmatmul.bf16.gmra.mxu0 %v273
        %v738 = vpop.f32.mrf.mxu0
        %v739 = vadd.f32 %v310, %v738
        %v740 = vpop.f32.mrf.mxu0
        %v741 = vadd.f32 %v310, %v740
        %742 = vdwg.mxu0
        %743 = vmatpush.bf16.msra.mxu0 %v443
        %744 = vmatpush.bf16.msra.mxu0 %v439
        %745 = vmatpush.bf16.msra.mxu0 %v435
        %746 = vmatpush.bf16.msra.mxu0 %v431
        %747 = vmatpush.bf16.msra.mxu0 %v427
        %748 = vmatpush.bf16.msra.mxu0 %v423
        %749 = vmatpush.bf16.msra.mxu0 %v419
        %750 = vmatpush.bf16.msra.mxu0 %v415
        %751 = vmatmul.bf16.gmra.mxu0 %v258
        %v752 = vpop.f32.mrf.mxu0
        %v753 = vadd.f32 %v311, %v752
        %v754 = vpop.f32.mrf.mxu0
        %v755 = vadd.f32 %v311, %v754
        %756 = vmatmul.bf16.gmra.mxu0 %v259
        %v757 = vpop.f32.mrf.mxu0
        %v758 = vadd.f32 %v311, %v757
        %v759 = vpop.f32.mrf.mxu0
        %v760 = vadd.f32 %v311, %v759
        %761 = vmatmul.bf16.gmra.mxu0 %v260
        %v762 = vpop.f32.mrf.mxu0
        %v763 = vadd.f32 %v311, %v762
        %v764 = vpop.f32.mrf.mxu0
        %v765 = vadd.f32 %v311, %v764
        %766 = vmatmul.bf16.gmra.mxu0 %v261
        %v767 = vpop.f32.mrf.mxu0
        %v768 = vadd.f32 %v311, %v767
        %v769 = vpop.f32.mrf.mxu0
        %v770 = vadd.f32 %v311, %v769
        %771 = vmatmul.bf16.gmra.mxu0 %v262
        %v772 = vpop.f32.mrf.mxu0
        %v773 = vadd.f32 %v311, %v772
        %v774 = vpop.f32.mrf.mxu0
        %v775 = vadd.f32 %v311, %v774
        %776 = vmatmul.bf16.gmra.mxu0 %v263
        %v777 = vpop.f32.mrf.mxu0
        %v778 = vadd.f32 %v311, %v777
        %v779 = vpop.f32.mrf.mxu0
        %v780 = vadd.f32 %v311, %v779
        %781 = vmatmul.bf16.gmra.mxu0 %v264
        %v782 = vpop.f32.mrf.mxu0
        %v783 = vadd.f32 %v311, %v782
        %v784 = vpop.f32.mrf.mxu0
        %v785 = vadd.f32 %v311, %v784
        %786 = vmatmul.bf16.gmra.mxu0 %v265
        %v787 = vpop.f32.mrf.mxu0
        %v788 = vadd.f32 %v311, %v787
        %v789 = vpop.f32.mrf.mxu0
        %v790 = vadd.f32 %v311, %v789
        %791 = vmatmul.bf16.gmra.mxu0 %v266
        %v792 = vpop.f32.mrf.mxu0
        %v793 = vadd.f32 %v311, %v792
        %v794 = vpop.f32.mrf.mxu0
        %v795 = vadd.f32 %v311, %v794
        %796 = vmatmul.bf16.gmra.mxu0 %v267
        %v797 = vpop.f32.mrf.mxu0
        %v798 = vadd.f32 %v311, %v797
        %v799 = vpop.f32.mrf.mxu0
        %v800 = vadd.f32 %v311, %v799
        %801 = vmatmul.bf16.gmra.mxu0 %v268
        %v802 = vpop.f32.mrf.mxu0
        %v803 = vadd.f32 %v311, %v802
        %v804 = vpop.f32.mrf.mxu0
        %v805 = vadd.f32 %v311, %v804
        %806 = vmatmul.bf16.gmra.mxu0 %v269
        %v807 = vpop.f32.mrf.mxu0
        %v808 = vadd.f32 %v311, %v807
        %v809 = vpop.f32.mrf.mxu0
        %v810 = vadd.f32 %v311, %v809
        %811 = vmatmul.bf16.gmra.mxu0 %v270
        %v812 = vpop.f32.mrf.mxu0
        %v813 = vadd.f32 %v311, %v812
        %v814 = vpop.f32.mrf.mxu0
        %v815 = vadd.f32 %v311, %v814
        %816 = vmatmul.bf16.gmra.mxu0 %v271
        %v817 = vpop.f32.mrf.mxu0
        %v818 = vadd.f32 %v311, %v817
        %v819 = vpop.f32.mrf.mxu0
        %v820 = vadd.f32 %v311, %v819
        %821 = vmatmul.bf16.gmra.mxu0 %v272
        %v822 = vpop.f32.mrf.mxu0
        %v823 = vadd.f32 %v311, %v822
        %v824 = vpop.f32.mrf.mxu0
        %v825 = vadd.f32 %v311, %v824
        %826 = vmatmul.bf16.gmra.mxu0 %v273
        %v827 = vpop.f32.mrf.mxu0
        %v828 = vadd.f32 %v311, %v827
        %v829 = vpop.f32.mrf.mxu0
        %v830 = vadd.f32 %v311, %v829
        %831 = vdwg.mxu0
        %v832 = vmul.f32 %v486, 0.5
        %v833 = vmul.f32 %v575, 0.5
        %v834 = vmul.f32 %v664, 0.5
        %v835 = vmul.f32 %v753, 0.5
        %v836 = vmul.f32 %v488, 0.5
        %v837 = vmul.f32 %v577, 0.5
        %v838 = vmul.f32 %v666, 0.5
        %v839 = vmul.f32 %v755, 0.5
        %v840 = vmul.f32 %v491, 0.5
        %v841 = vmul.f32 %v580, 0.5
        %v842 = vmul.f32 %v669, 0.5
        %v843 = vmul.f32 %v758, 0.5
        %v844 = vmul.f32 %v493, 0.5
        %v845 = vmul.f32 %v582, 0.5
        %v846 = vmul.f32 %v671, 0.5
        %v847 = vmul.f32 %v760, 0.5
        %v848 = vmul.f32 %v496, 0.5
        %v849 = vmul.f32 %v585, 0.5
        %v850 = vmul.f32 %v674, 0.5
        %v851 = vmul.f32 %v763, 0.5
        %v852 = vmul.f32 %v498, 0.5
        %v853 = vmul.f32 %v587, 0.5
        %v854 = vmul.f32 %v676, 0.5
        %v855 = vmul.f32 %v765, 0.5
        %v856 = vmul.f32 %v501, 0.5
        %v857 = vmul.f32 %v590, 0.5
        %v858 = vmul.f32 %v679, 0.5
        %v859 = vmul.f32 %v768, 0.5
        %v860 = vmul.f32 %v503, 0.5
        %v861 = vmul.f32 %v592, 0.5
        %v862 = vmul.f32 %v681, 0.5
        %v863 = vmul.f32 %v770, 0.5
        %v864 = vmul.f32 %v506, 0.5
        %v865 = vmul.f32 %v595, 0.5
        %v866 = vmul.f32 %v684, 0.5
        %v867 = vmul.f32 %v773, 0.5
        %v868 = vmul.f32 %v508, 0.5
        %v869 = vmul.f32 %v597, 0.5
        %v870 = vmul.f32 %v686, 0.5
        %v871 = vmul.f32 %v775, 0.5
        %v872 = vmul.f32 %v511, 0.5
        %v873 = vmul.f32 %v600, 0.5
        %v874 = vmul.f32 %v689, 0.5
        %v875 = vmul.f32 %v778, 0.5
        %v876 = vmul.f32 %v513, 0.5
        %v877 = vmul.f32 %v602, 0.5
        %v878 = vmul.f32 %v691, 0.5
        %v879 = vmul.f32 %v780, 0.5
        %v880 = vmul.f32 %v516, 0.5
        %v881 = vmul.f32 %v605, 0.5
        %v882 = vmul.f32 %v694, 0.5
        %v883 = vmul.f32 %v783, 0.5
        %v884 = vmul.f32 %v518, 0.5
        %v885 = vmul.f32 %v607, 0.5
        %v886 = vmul.f32 %v696, 0.5
        %v887 = vmul.f32 %v785, 0.5
        %v888 = vmul.f32 %v521, 0.5
        %v889 = vmul.f32 %v610, 0.5
        %v890 = vmul.f32 %v699, 0.5
        %v891 = vmul.f32 %v788, 0.5
        %v892 = vmul.f32 %v523, 0.5
        %v893 = vmul.f32 %v612, 0.5
        %v894 = vmul.f32 %v701, 0.5
        %v895 = vmul.f32 %v790, 0.5
        %v896 = vmul.f32 %v526, 0.5
        %v897 = vmul.f32 %v615, 0.5
        %v898 = vmul.f32 %v704, 0.5
        %v899 = vmul.f32 %v793, 0.5
        %v900 = vmul.f32 %v528, 0.5
        %v901 = vmul.f32 %v617, 0.5
        %v902 = vmul.f32 %v706, 0.5
        %v903 = vmul.f32 %v795, 0.5
        %v904 = vmul.f32 %v531, 0.5
        %v905 = vmul.f32 %v620, 0.5
        %v906 = vmul.f32 %v709, 0.5
        %v907 = vmul.f32 %v798, 0.5
        %v908 = vmul.f32 %v533, 0.5
        %v909 = vmul.f32 %v622, 0.5
        %v910 = vmul.f32 %v711, 0.5
        %v911 = vmul.f32 %v800, 0.5
        %v912 = vmul.f32 %v536, 0.5
        %v913 = vmul.f32 %v625, 0.5
        %v914 = vmul.f32 %v714, 0.5
        %v915 = vmul.f32 %v803, 0.5
        %v916 = vmul.f32 %v538, 0.5
        %v917 = vmul.f32 %v627, 0.5
        %v918 = vmul.f32 %v716, 0.5
        %v919 = vmul.f32 %v805, 0.5
        %v920 = vmul.f32 %v541, 0.5
        %v921 = vmul.f32 %v630, 0.5
        %v922 = vmul.f32 %v719, 0.5
        %v923 = vmul.f32 %v808, 0.5
        %v924 = vmul.f32 %v543, 0.5
        %v925 = vmul.f32 %v632, 0.5
        %v926 = vmul.f32 %v721, 0.5
        %v927 = vmul.f32 %v810, 0.5
        %v928 = vmul.f32 %v546, 0.5
        %v929 = vmul.f32 %v635, 0.5
        %v930 = vmul.f32 %v724, 0.5
        %v931 = vmul.f32 %v813, 0.5
        %v932 = vmul.f32 %v548, 0.5
        %v933 = vmul.f32 %v637, 0.5
        %v934 = vmul.f32 %v726, 0.5
        %v935 = vmul.f32 %v815, 0.5
        %v936 = vmul.f32 %v551, 0.5
        %v937 = vmul.f32 %v640, 0.5
        %v938 = vmul.f32 %v729, 0.5
        %v939 = vmul.f32 %v818, 0.5
        %v940 = vmul.f32 %v553, 0.5
        %v941 = vmul.f32 %v642, 0.5
        %v942 = vmul.f32 %v731, 0.5
        %v943 = vmul.f32 %v820, 0.5
        %v944 = vmul.f32 %v556, 0.5
        %v945 = vmul.f32 %v645, 0.5
        %v946 = vmul.f32 %v734, 0.5
        %v947 = vmul.f32 %v823, 0.5
        %v948 = vmul.f32 %v558, 0.5
        %v949 = vmul.f32 %v647, 0.5
        %v950 = vmul.f32 %v736, 0.5
        %v951 = vmul.f32 %v825, 0.5
        %v952 = vmul.f32 %v561, 0.5
        %v953 = vmul.f32 %v650, 0.5
        %v954 = vmul.f32 %v739, 0.5
        %v955 = vmul.f32 %v828, 0.5
        %v956 = vmul.f32 %v563, 0.5
        %v957 = vmul.f32 %v652, 0.5
        %v958 = vmul.f32 %v741, 0.5
        %v959 = vmul.f32 %v830, 0.5
        %v960 = vmul.f32 %v486, 0.044715
        %v961 = vmul.f32 %v575, 0.044715
        %v962 = vmul.f32 %v664, 0.044715
        %v963 = vmul.f32 %v753, 0.044715
        %v964 = vmul.f32 %v488, 0.044715
        %v965 = vmul.f32 %v577, 0.044715
        %v966 = vmul.f32 %v666, 0.044715
        %v967 = vmul.f32 %v755, 0.044715
        %v968 = vmul.f32 %v491, 0.044715
        %v969 = vmul.f32 %v580, 0.044715
        %v970 = vmul.f32 %v669, 0.044715
        %v971 = vmul.f32 %v758, 0.044715
        %v972 = vmul.f32 %v493, 0.044715
        %v973 = vmul.f32 %v582, 0.044715
        %v974 = vmul.f32 %v671, 0.044715
        %v975 = vmul.f32 %v760, 0.044715
        %v976 = vmul.f32 %v496, 0.044715
        %v977 = vmul.f32 %v585, 0.044715
        %v978 = vmul.f32 %v674, 0.044715
        %v979 = vmul.f32 %v763, 0.044715
        %v980 = vmul.f32 %v498, 0.044715
        %v981 = vmul.f32 %v587, 0.044715
        %v982 = vmul.f32 %v676, 0.044715
        %v983 = vmul.f32 %v765, 0.044715
        %v984 = vmul.f32 %v501, 0.044715
        %v985 = vmul.f32 %v590, 0.044715
        %v986 = vmul.f32 %v679, 0.044715
        %v987 = vmul.f32 %v768, 0.044715
        %v988 = vmul.f32 %v503, 0.044715
        %v989 = vmul.f32 %v592, 0.044715
        %v990 = vmul.f32 %v681, 0.044715
        %v991 = vmul.f32 %v770, 0.044715
        %v992 = vmul.f32 %v506, 0.044715
        %v993 = vmul.f32 %v595, 0.044715
        %v994 = vmul.f32 %v684, 0.044715
        %v995 = vmul.f32 %v773, 0.044715
        %v996 = vmul.f32 %v508, 0.044715
        %v997 = vmul.f32 %v597, 0.044715
        %v998 = vmul.f32 %v686, 0.044715
        %v999 = vmul.f32 %v775, 0.044715
        %v1000 = vmul.f32 %v511, 0.044715
        %v1001 = vmul.f32 %v600, 0.044715
        %v1002 = vmul.f32 %v689, 0.044715
        %v1003 = vmul.f32 %v778, 0.044715
        %v1004 = vmul.f32 %v513, 0.044715
        %v1005 = vmul.f32 %v602, 0.044715
        %v1006 = vmul.f32 %v691, 0.044715
        %v1007 = vmul.f32 %v780, 0.044715
        %v1008 = vmul.f32 %v516, 0.044715
        %v1009 = vmul.f32 %v605, 0.044715
        %v1010 = vmul.f32 %v694, 0.044715
        %v1011 = vmul.f32 %v783, 0.044715
        %v1012 = vmul.f32 %v518, 0.044715
        %v1013 = vmul.f32 %v607, 0.044715
        %v1014 = vmul.f32 %v696, 0.044715
        %v1015 = vmul.f32 %v785, 0.044715
        %v1016 = vmul.f32 %v521, 0.044715
        %v1017 = vmul.f32 %v610, 0.044715
        %v1018 = vmul.f32 %v699, 0.044715
        %v1019 = vmul.f32 %v788, 0.044715
        %v1020 = vmul.f32 %v523, 0.044715
        %v1021 = vmul.f32 %v612, 0.044715
        %v1022 = vmul.f32 %v701, 0.044715
        %v1023 = vmul.f32 %v790, 0.044715
        %v1024 = vmul.f32 %v526, 0.044715
        %v1025 = vmul.f32 %v615, 0.044715
        %v1026 = vmul.f32 %v704, 0.044715
        %v1027 = vmul.f32 %v793, 0.044715
        %v1028 = vmul.f32 %v528, 0.044715
        %v1029 = vmul.f32 %v617, 0.044715
        %v1030 = vmul.f32 %v706, 0.044715
        %v1031 = vmul.f32 %v795, 0.044715
        %v1032 = vmul.f32 %v531, 0.044715
        %v1033 = vmul.f32 %v620, 0.044715
        %v1034 = vmul.f32 %v709, 0.044715
        %v1035 = vmul.f32 %v798, 0.044715
        %v1036 = vmul.f32 %v533, 0.044715
        %v1037 = vmul.f32 %v622, 0.044715
        %v1038 = vmul.f32 %v711, 0.044715
        %v1039 = vmul.f32 %v800, 0.044715
        %v1040 = vmul.f32 %v536, 0.044715
        %v1041 = vmul.f32 %v625, 0.044715
        %v1042 = vmul.f32 %v714, 0.044715
        %v1043 = vmul.f32 %v803, 0.044715
        %v1044 = vmul.f32 %v538, 0.044715
        %v1045 = vmul.f32 %v627, 0.044715
        %v1046 = vmul.f32 %v716, 0.044715
        %v1047 = vmul.f32 %v805, 0.044715
        %v1048 = vmul.f32 %v541, 0.044715
        %v1049 = vmul.f32 %v630, 0.044715
        %v1050 = vmul.f32 %v719, 0.044715
        %v1051 = vmul.f32 %v808, 0.044715
        %v1052 = vmul.f32 %v543, 0.044715
        %v1053 = vmul.f32 %v632, 0.044715
        %v1054 = vmul.f32 %v721, 0.044715
        %v1055 = vmul.f32 %v810, 0.044715
        %v1056 = vmul.f32 %v546, 0.044715
        %v1057 = vmul.f32 %v635, 0.044715
        %v1058 = vmul.f32 %v724, 0.044715
        %v1059 = vmul.f32 %v813, 0.044715
        %v1060 = vmul.f32 %v548, 0.044715
        %v1061 = vmul.f32 %v637, 0.044715
        %v1062 = vmul.f32 %v726, 0.044715
        %v1063 = vmul.f32 %v815, 0.044715
        %v1064 = vmul.f32 %v551, 0.044715
        %v1065 = vmul.f32 %v640, 0.044715
        %v1066 = vmul.f32 %v729, 0.044715
        %v1067 = vmul.f32 %v818, 0.044715
        %v1068 = vmul.f32 %v553, 0.044715
        %v1069 = vmul.f32 %v642, 0.044715
        %v1070 = vmul.f32 %v731, 0.044715
        %v1071 = vmul.f32 %v820, 0.044715
        %v1072 = vmul.f32 %v556, 0.044715
        %v1073 = vmul.f32 %v645, 0.044715
        %v1074 = vmul.f32 %v734, 0.044715
        %v1075 = vmul.f32 %v823, 0.044715
        %v1076 = vmul.f32 %v558, 0.044715
        %v1077 = vmul.f32 %v647, 0.044715
        %v1078 = vmul.f32 %v736, 0.044715
        %v1079 = vmul.f32 %v825, 0.044715
        %v1080 = vmul.f32 %v561, 0.044715
        %v1081 = vmul.f32 %v650, 0.044715
        %v1082 = vmul.f32 %v739, 0.044715
        %v1083 = vmul.f32 %v828, 0.044715
        %v1084 = vmul.f32 %v563, 0.044715
        %v1085 = vmul.f32 %v652, 0.044715
        %v1086 = vmul.f32 %v741, 0.044715
        %v1087 = vmul.f32 %v830, 0.044715
        %v1088 = vmul.f32 %v960, %v486
        %v1089 = vmul.f32 %v961, %v575
        %v1090 = vmul.f32 %v962, %v664
        %v1091 = vmul.f32 %v963, %v753
        %v1092 = vmul.f32 %v964, %v488
        %v1093 = vmul.f32 %v965, %v577
        %v1094 = vmul.f32 %v966, %v666
        %v1095 = vmul.f32 %v967, %v755
        %v1096 = vmul.f32 %v968, %v491
        %v1097 = vmul.f32 %v969, %v580
        %v1098 = vmul.f32 %v970, %v669
        %v1099 = vmul.f32 %v971, %v758
        %v1100 = vmul.f32 %v972, %v493
        %v1101 = vmul.f32 %v973, %v582
        %v1102 = vmul.f32 %v974, %v671
        %v1103 = vmul.f32 %v975, %v760
        %v1104 = vmul.f32 %v976, %v496
        %v1105 = vmul.f32 %v977, %v585
        %v1106 = vmul.f32 %v978, %v674
        %v1107 = vmul.f32 %v979, %v763
        %v1108 = vmul.f32 %v980, %v498
        %v1109 = vmul.f32 %v981, %v587
        %v1110 = vmul.f32 %v982, %v676
        %v1111 = vmul.f32 %v983, %v765
        %v1112 = vmul.f32 %v984, %v501
        %v1113 = vmul.f32 %v985, %v590
        %v1114 = vmul.f32 %v986, %v679
        %v1115 = vmul.f32 %v987, %v768
        %v1116 = vmul.f32 %v988, %v503
        %v1117 = vmul.f32 %v989, %v592
        %v1118 = vmul.f32 %v990, %v681
        %v1119 = vmul.f32 %v991, %v770
        %v1120 = vmul.f32 %v992, %v506
        %v1121 = vmul.f32 %v993, %v595
        %v1122 = vmul.f32 %v994, %v684
        %v1123 = vmul.f32 %v995, %v773
        %v1124 = vmul.f32 %v996, %v508
        %v1125 = vmul.f32 %v997, %v597
        %v1126 = vmul.f32 %v998, %v686
        %v1127 = vmul.f32 %v999, %v775
        %v1128 = vmul.f32 %v1000, %v511
        %v1129 = vmul.f32 %v1001, %v600
        %v1130 = vmul.f32 %v1002, %v689
        %v1131 = vmul.f32 %v1003, %v778
        %v1132 = vmul.f32 %v1004, %v513
        %v1133 = vmul.f32 %v1005, %v602
        %v1134 = vmul.f32 %v1006, %v691
        %v1135 = vmul.f32 %v1007, %v780
        %v1136 = vmul.f32 %v1008, %v516
        %v1137 = vmul.f32 %v1009, %v605
        %v1138 = vmul.f32 %v1010, %v694
        %v1139 = vmul.f32 %v1011, %v783
        %v1140 = vmul.f32 %v1012, %v518
        %v1141 = vmul.f32 %v1013, %v607
        %v1142 = vmul.f32 %v1014, %v696
        %v1143 = vmul.f32 %v1015, %v785
        %v1144 = vmul.f32 %v1016, %v521
        %v1145 = vmul.f32 %v1017, %v610
        %v1146 = vmul.f32 %v1018, %v699
        %v1147 = vmul.f32 %v1019, %v788
        %v1148 = vmul.f32 %v1020, %v523
        %v1149 = vmul.f32 %v1021, %v612
        %v1150 = vmul.f32 %v1022, %v701
        %v1151 = vmul.f32 %v1023, %v790
        %v1152 = vmul.f32 %v1024, %v526
        %v1153 = vmul.f32 %v1025, %v615
        %v1154 = vmul.f32 %v1026, %v704
        %v1155 = vmul.f32 %v1027, %v793
        %v1156 = vmul.f32 %v1028, %v528
        %v1157 = vmul.f32 %v1029, %v617
        %v1158 = vmul.f32 %v1030, %v706
        %v1159 = vmul.f32 %v1031, %v795
        %v1160 = vmul.f32 %v1032, %v531
        %v1161 = vmul.f32 %v1033, %v620
        %v1162 = vmul.f32 %v1034, %v709
        %v1163 = vmul.f32 %v1035, %v798
        %v1164 = vmul.f32 %v1036, %v533
        %v1165 = vmul.f32 %v1037, %v622
        %v1166 = vmul.f32 %v1038, %v711
        %v1167 = vmul.f32 %v1039, %v800
        %v1168 = vmul.f32 %v1040, %v536
        %v1169 = vmul.f32 %v1041, %v625
        %v1170 = vmul.f32 %v1042, %v714
        %v1171 = vmul.f32 %v1043, %v803
        %v1172 = vmul.f32 %v1044, %v538
        %v1173 = vmul.f32 %v1045, %v627
        %v1174 = vmul.f32 %v1046, %v716
        %v1175 = vmul.f32 %v1047, %v805
        %v1176 = vmul.f32 %v1048, %v541
        %v1177 = vmul.f32 %v1049, %v630
        %v1178 = vmul.f32 %v1050, %v719
        %v1179 = vmul.f32 %v1051, %v808
        %v1180 = vmul.f32 %v1052, %v543
        %v1181 = vmul.f32 %v1053, %v632
        %v1182 = vmul.f32 %v1054, %v721
        %v1183 = vmul.f32 %v1055, %v810
        %v1184 = vmul.f32 %v1056, %v546
        %v1185 = vmul.f32 %v1057, %v635
        %v1186 = vmul.f32 %v1058, %v724
        %v1187 = vmul.f32 %v1059, %v813
        %v1188 = vmul.f32 %v1060, %v548
        %v1189 = vmul.f32 %v1061, %v637
        %v1190 = vmul.f32 %v1062, %v726
        %v1191 = vmul.f32 %v1063, %v815
        %v1192 = vmul.f32 %v1064, %v551
        %v1193 = vmul.f32 %v1065, %v640
        %v1194 = vmul.f32 %v1066, %v729
        %v1195 = vmul.f32 %v1067, %v818
        %v1196 = vmul.f32 %v1068, %v553
        %v1197 = vmul.f32 %v1069, %v642
        %v1198 = vmul.f32 %v1070, %v731
        %v1199 = vmul.f32 %v1071, %v820
        %v1200 = vmul.f32 %v1072, %v556
        %v1201 = vmul.f32 %v1073, %v645
        %v1202 = vmul.f32 %v1074, %v734
        %v1203 = vmul.f32 %v1075, %v823
        %v1204 = vmul.f32 %v1076, %v558
        %v1205 = vmul.f32 %v1077, %v647
        %v1206 = vmul.f32 %v1078, %v736
        %v1207 = vmul.f32 %v1079, %v825
        %v1208 = vmul.f32 %v1080, %v561
        %v1209 = vmul.f32 %v1081, %v650
        %v1210 = vmul.f32 %v1082, %v739
        %v1211 = vmul.f32 %v1083, %v828
        %v1212 = vmul.f32 %v1084, %v563
        %v1213 = vmul.f32 %v1085, %v652
        %v1214 = vmul.f32 %v1086, %v741
        %v1215 = vmul.f32 %v1087, %v830
        %v1216 = vmul.f32 %v1088, %v486
        %v1217 = vmul.f32 %v1089, %v575
        %v1218 = vmul.f32 %v1090, %v664
        %v1219 = vmul.f32 %v1091, %v753
        %v1220 = vmul.f32 %v1092, %v488
        %v1221 = vmul.f32 %v1093, %v577
        %v1222 = vmul.f32 %v1094, %v666
        %v1223 = vmul.f32 %v1095, %v755
        %v1224 = vmul.f32 %v1096, %v491
        %v1225 = vmul.f32 %v1097, %v580
        %v1226 = vmul.f32 %v1098, %v669
        %v1227 = vmul.f32 %v1099, %v758
        %v1228 = vmul.f32 %v1100, %v493
        %v1229 = vmul.f32 %v1101, %v582
        %v1230 = vmul.f32 %v1102, %v671
        %v1231 = vmul.f32 %v1103, %v760
        %v1232 = vmul.f32 %v1104, %v496
        %v1233 = vmul.f32 %v1105, %v585
        %v1234 = vmul.f32 %v1106, %v674
        %v1235 = vmul.f32 %v1107, %v763
        %v1236 = vmul.f32 %v1108, %v498
        %v1237 = vmul.f32 %v1109, %v587
        %v1238 = vmul.f32 %v1110, %v676
        %v1239 = vmul.f32 %v1111, %v765
        %v1240 = vmul.f32 %v1112, %v501
        %v1241 = vmul.f32 %v1113, %v590
        %v1242 = vmul.f32 %v1114, %v679
        %v1243 = vmul.f32 %v1115, %v768
        %v1244 = vmul.f32 %v1116, %v503
        %v1245 = vmul.f32 %v1117, %v592
        %v1246 = vmul.f32 %v1118, %v681
        %v1247 = vmul.f32 %v1119, %v770
        %v1248 = vmul.f32 %v1120, %v506
        %v1249 = vmul.f32 %v1121, %v595
        %v1250 = vmul.f32 %v1122, %v684
        %v1251 = vmul.f32 %v1123, %v773
        %v1252 = vmul.f32 %v1124, %v508
        %v1253 = vmul.f32 %v1125, %v597
        %v1254 = vmul.f32 %v1126, %v686
        %v1255 = vmul.f32 %v1127, %v775
        %v1256 = vmul.f32 %v1128, %v511
        %v1257 = vmul.f32 %v1129, %v600
        %v1258 = vmul.f32 %v1130, %v689
        %v1259 = vmul.f32 %v1131, %v778
        %v1260 = vmul.f32 %v1132, %v513
        %v1261 = vmul.f32 %v1133, %v602
        %v1262 = vmul.f32 %v1134, %v691
        %v1263 = vmul.f32 %v1135, %v780
        %v1264 = vmul.f32 %v1136, %v516
        %v1265 = vmul.f32 %v1137, %v605
        %v1266 = vmul.f32 %v1138, %v694
        %v1267 = vmul.f32 %v1139, %v783
        %v1268 = vmul.f32 %v1140, %v518
        %v1269 = vmul.f32 %v1141, %v607
        %v1270 = vmul.f32 %v1142, %v696
        %v1271 = vmul.f32 %v1143, %v785
        %v1272 = vmul.f32 %v1144, %v521
        %v1273 = vmul.f32 %v1145, %v610
        %v1274 = vmul.f32 %v1146, %v699
        %v1275 = vmul.f32 %v1147, %v788
        %v1276 = vmul.f32 %v1148, %v523
        %v1277 = vmul.f32 %v1149, %v612
        %v1278 = vmul.f32 %v1150, %v701
        %v1279 = vmul.f32 %v1151, %v790
        %v1280 = vmul.f32 %v1152, %v526
        %v1281 = vmul.f32 %v1153, %v615
        %v1282 = vmul.f32 %v1154, %v704
        %v1283 = vmul.f32 %v1155, %v793
        %v1284 = vmul.f32 %v1156, %v528
        %v1285 = vmul.f32 %v1157, %v617
        %v1286 = vmul.f32 %v1158, %v706
        %v1287 = vmul.f32 %v1159, %v795
        %v1288 = vmul.f32 %v1160, %v531
        %v1289 = vmul.f32 %v1161, %v620
        %v1290 = vmul.f32 %v1162, %v709
        %v1291 = vmul.f32 %v1163, %v798
        %v1292 = vmul.f32 %v1164, %v533
        %v1293 = vmul.f32 %v1165, %v622
        %v1294 = vmul.f32 %v1166, %v711
        %v1295 = vmul.f32 %v1167, %v800
        %v1296 = vmul.f32 %v1168, %v536
        %v1297 = vmul.f32 %v1169, %v625
        %v1298 = vmul.f32 %v1170, %v714
        %v1299 = vmul.f32 %v1171, %v803
        %v1300 = vmul.f32 %v1172, %v538
        %v1301 = vmul.f32 %v1173, %v627
        %v1302 = vmul.f32 %v1174, %v716
        %v1303 = vmul.f32 %v1175, %v805
        %v1304 = vmul.f32 %v1176, %v541
        %v1305 = vmul.f32 %v1177, %v630
        %v1306 = vmul.f32 %v1178, %v719
        %v1307 = vmul.f32 %v1179, %v808
        %v1308 = vmul.f32 %v1180, %v543
        %v1309 = vmul.f32 %v1181, %v632
        %v1310 = vmul.f32 %v1182, %v721
        %v1311 = vmul.f32 %v1183, %v810
        %v1312 = vmul.f32 %v1184, %v546
        %v1313 = vmul.f32 %v1185, %v635
        %v1314 = vmul.f32 %v1186, %v724
        %v1315 = vmul.f32 %v1187, %v813
        %v1316 = vmul.f32 %v1188, %v548
        %v1317 = vmul.f32 %v1189, %v637
        %v1318 = vmul.f32 %v1190, %v726
        %v1319 = vmul.f32 %v1191, %v815
        %v1320 = vmul.f32 %v1192, %v551
        %v1321 = vmul.f32 %v1193, %v640
        %v1322 = vmul.f32 %v1194, %v729
        %v1323 = vmul.f32 %v1195, %v818
        %v1324 = vmul.f32 %v1196, %v553
        %v1325 = vmul.f32 %v1197, %v642
        %v1326 = vmul.f32 %v1198, %v731
        %v1327 = vmul.f32 %v1199, %v820
        %v1328 = vmul.f32 %v1200, %v556
        %v1329 = vmul.f32 %v1201, %v645
        %v1330 = vmul.f32 %v1202, %v734
        %v1331 = vmul.f32 %v1203, %v823
        %v1332 = vmul.f32 %v1204, %v558
        %v1333 = vmul.f32 %v1205, %v647
        %v1334 = vmul.f32 %v1206, %v736
        %v1335 = vmul.f32 %v1207, %v825
        %v1336 = vmul.f32 %v1208, %v561
        %v1337 = vmul.f32 %v1209, %v650
        %v1338 = vmul.f32 %v1210, %v739
        %v1339 = vmul.f32 %v1211, %v828
        %v1340 = vmul.f32 %v1212, %v563
        %v1341 = vmul.f32 %v1213, %v652
        %v1342 = vmul.f32 %v1214, %v741
        %v1343 = vmul.f32 %v1215, %v830
        %v1344 = vadd.f32 %v486, %v1216
        %v1345 = vadd.f32 %v575, %v1217
        %v1346 = vadd.f32 %v664, %v1218
        %v1347 = vadd.f32 %v753, %v1219
        %v1348 = vadd.f32 %v488, %v1220
        %v1349 = vadd.f32 %v577, %v1221
        %v1350 = vadd.f32 %v666, %v1222
        %v1351 = vadd.f32 %v755, %v1223
        %v1352 = vadd.f32 %v491, %v1224
        %v1353 = vadd.f32 %v580, %v1225
        %v1354 = vadd.f32 %v669, %v1226
        %v1355 = vadd.f32 %v758, %v1227
        %v1356 = vadd.f32 %v493, %v1228
        %v1357 = vadd.f32 %v582, %v1229
        %v1358 = vadd.f32 %v671, %v1230
        %v1359 = vadd.f32 %v760, %v1231
        %v1360 = vadd.f32 %v496, %v1232
        %v1361 = vadd.f32 %v585, %v1233
        %v1362 = vadd.f32 %v674, %v1234
        %v1363 = vadd.f32 %v763, %v1235
        %v1364 = vadd.f32 %v498, %v1236
        %v1365 = vadd.f32 %v587, %v1237
        %v1366 = vadd.f32 %v676, %v1238
        %v1367 = vadd.f32 %v765, %v1239
        %v1368 = vadd.f32 %v501, %v1240
        %v1369 = vadd.f32 %v590, %v1241
        %v1370 = vadd.f32 %v679, %v1242
        %v1371 = vadd.f32 %v768, %v1243
        %v1372 = vadd.f32 %v503, %v1244
        %v1373 = vadd.f32 %v592, %v1245
        %v1374 = vadd.f32 %v681, %v1246
        %v1375 = vadd.f32 %v770, %v1247
        %v1376 = vadd.f32 %v506, %v1248
        %v1377 = vadd.f32 %v595, %v1249
        %v1378 = vadd.f32 %v684, %v1250
        %v1379 = vadd.f32 %v773, %v1251
        %v1380 = vadd.f32 %v508, %v1252
        %v1381 = vadd.f32 %v597, %v1253
        %v1382 = vadd.f32 %v686, %v1254
        %v1383 = vadd.f32 %v775, %v1255
        %v1384 = vadd.f32 %v511, %v1256
        %v1385 = vadd.f32 %v600, %v1257
        %v1386 = vadd.f32 %v689, %v1258
        %v1387 = vadd.f32 %v778, %v1259
        %v1388 = vadd.f32 %v513, %v1260
        %v1389 = vadd.f32 %v602, %v1261
        %v1390 = vadd.f32 %v691, %v1262
        %v1391 = vadd.f32 %v780, %v1263
        %v1392 = vadd.f32 %v516, %v1264
        %v1393 = vadd.f32 %v605, %v1265
        %v1394 = vadd.f32 %v694, %v1266
        %v1395 = vadd.f32 %v783, %v1267
        %v1396 = vadd.f32 %v518, %v1268
        %v1397 = vadd.f32 %v607, %v1269
        %v1398 = vadd.f32 %v696, %v1270
        %v1399 = vadd.f32 %v785, %v1271
        %v1400 = vadd.f32 %v521, %v1272
        %v1401 = vadd.f32 %v610, %v1273
        %v1402 = vadd.f32 %v699, %v1274
        %v1403 = vadd.f32 %v788, %v1275
        %v1404 = vadd.f32 %v523, %v1276
        %v1405 = vadd.f32 %v612, %v1277
        %v1406 = vadd.f32 %v701, %v1278
        %v1407 = vadd.f32 %v790, %v1279
        %v1408 = vadd.f32 %v526, %v1280
        %v1409 = vadd.f32 %v615, %v1281
        %v1410 = vadd.f32 %v704, %v1282
        %v1411 = vadd.f32 %v793, %v1283
        %v1412 = vadd.f32 %v528, %v1284
        %v1413 = vadd.f32 %v617, %v1285
        %v1414 = vadd.f32 %v706, %v1286
        %v1415 = vadd.f32 %v795, %v1287
        %v1416 = vadd.f32 %v531, %v1288
        %v1417 = vadd.f32 %v620, %v1289
        %v1418 = vadd.f32 %v709, %v1290
        %v1419 = vadd.f32 %v798, %v1291
        %v1420 = vadd.f32 %v533, %v1292
        %v1421 = vadd.f32 %v622, %v1293
        %v1422 = vadd.f32 %v711, %v1294
        %v1423 = vadd.f32 %v800, %v1295
        %v1424 = vadd.f32 %v536, %v1296
        %v1425 = vadd.f32 %v625, %v1297
        %v1426 = vadd.f32 %v714, %v1298
        %v1427 = vadd.f32 %v803, %v1299
        %v1428 = vadd.f32 %v538, %v1300
        %v1429 = vadd.f32 %v627, %v1301
        %v1430 = vadd.f32 %v716, %v1302
        %v1431 = vadd.f32 %v805, %v1303
        %v1432 = vadd.f32 %v541, %v1304
        %v1433 = vadd.f32 %v630, %v1305
        %v1434 = vadd.f32 %v719, %v1306
        %v1435 = vadd.f32 %v808, %v1307
        %v1436 = vadd.f32 %v543, %v1308
        %v1437 = vadd.f32 %v632, %v1309
        %v1438 = vadd.f32 %v721, %v1310
        %v1439 = vadd.f32 %v810, %v1311
        %v1440 = vadd.f32 %v546, %v1312
        %v1441 = vadd.f32 %v635, %v1313
        %v1442 = vadd.f32 %v724, %v1314
        %v1443 = vadd.f32 %v813, %v1315
        %v1444 = vadd.f32 %v548, %v1316
        %v1445 = vadd.f32 %v637, %v1317
        %v1446 = vadd.f32 %v726, %v1318
        %v1447 = vadd.f32 %v815, %v1319
        %v1448 = vadd.f32 %v551, %v1320
        %v1449 = vadd.f32 %v640, %v1321
        %v1450 = vadd.f32 %v729, %v1322
        %v1451 = vadd.f32 %v818, %v1323
        %v1452 = vadd.f32 %v553, %v1324
        %v1453 = vadd.f32 %v642, %v1325
        %v1454 = vadd.f32 %v731, %v1326
        %v1455 = vadd.f32 %v820, %v1327
        %v1456 = vadd.f32 %v556, %v1328
        %v1457 = vadd.f32 %v645, %v1329
        %v1458 = vadd.f32 %v734, %v1330
        %v1459 = vadd.f32 %v823, %v1331
        %v1460 = vadd.f32 %v558, %v1332
        %v1461 = vadd.f32 %v647, %v1333
        %v1462 = vadd.f32 %v736, %v1334
        %v1463 = vadd.f32 %v825, %v1335
        %v1464 = vadd.f32 %v561, %v1336
        %v1465 = vadd.f32 %v650, %v1337
        %v1466 = vadd.f32 %v739, %v1338
        %v1467 = vadd.f32 %v828, %v1339
        %v1468 = vadd.f32 %v563, %v1340
        %v1469 = vadd.f32 %v652, %v1341
        %v1470 = vadd.f32 %v741, %v1342
        %v1471 = vadd.f32 %v830, %v1343
        %v1472 = vmul.f32 %v1344, 0.7978846
        %v1473 = vmul.f32 %v1345, 0.7978846
        %v1474 = vmul.f32 %v1346, 0.7978846
        %v1475 = vmul.f32 %v1347, 0.7978846
        %v1476 = vmul.f32 %v1348, 0.7978846
        %v1477 = vmul.f32 %v1349, 0.7978846
        %v1478 = vmul.f32 %v1350, 0.7978846
        %v1479 = vmul.f32 %v1351, 0.7978846
        %v1480 = vmul.f32 %v1352, 0.7978846
        %v1481 = vmul.f32 %v1353, 0.7978846
        %v1482 = vmul.f32 %v1354, 0.7978846
        %v1483 = vmul.f32 %v1355, 0.7978846
        %v1484 = vmul.f32 %v1356, 0.7978846
        %v1485 = vmul.f32 %v1357, 0.7978846
        %v1486 = vmul.f32 %v1358, 0.7978846
        %v1487 = vmul.f32 %v1359, 0.7978846
        %v1488 = vmul.f32 %v1360, 0.7978846
        %v1489 = vmul.f32 %v1361, 0.7978846
        %v1490 = vmul.f32 %v1362, 0.7978846
        %v1491 = vmul.f32 %v1363, 0.7978846
        %v1492 = vmul.f32 %v1364, 0.7978846
        %v1493 = vmul.f32 %v1365, 0.7978846
        %v1494 = vmul.f32 %v1366, 0.7978846
        %v1495 = vmul.f32 %v1367, 0.7978846
        %v1496 = vmul.f32 %v1368, 0.7978846
        %v1497 = vmul.f32 %v1369, 0.7978846
        %v1498 = vmul.f32 %v1370, 0.7978846
        %v1499 = vmul.f32 %v1371, 0.7978846
        %v1500 = vmul.f32 %v1372, 0.7978846
        %v1501 = vmul.f32 %v1373, 0.7978846
        %v1502 = vmul.f32 %v1374, 0.7978846
        %v1503 = vmul.f32 %v1375, 0.7978846
        %v1504 = vmul.f32 %v1376, 0.7978846
        %v1505 = vmul.f32 %v1377, 0.7978846
        %v1506 = vmul.f32 %v1378, 0.7978846
        %v1507 = vmul.f32 %v1379, 0.7978846
        %v1508 = vmul.f32 %v1380, 0.7978846
        %v1509 = vmul.f32 %v1381, 0.7978846
        %v1510 = vmul.f32 %v1382, 0.7978846
        %v1511 = vmul.f32 %v1383, 0.7978846
        %v1512 = vmul.f32 %v1384, 0.7978846
        %v1513 = vmul.f32 %v1385, 0.7978846
        %v1514 = vmul.f32 %v1386, 0.7978846
        %v1515 = vmul.f32 %v1387, 0.7978846
        %v1516 = vmul.f32 %v1388, 0.7978846
        %v1517 = vmul.f32 %v1389, 0.7978846
        %v1518 = vmul.f32 %v1390, 0.7978846
        %v1519 = vmul.f32 %v1391, 0.7978846
        %v1520 = vmul.f32 %v1392, 0.7978846
        %v1521 = vmul.f32 %v1393, 0.7978846
        %v1522 = vmul.f32 %v1394, 0.7978846
        %v1523 = vmul.f32 %v1395, 0.7978846
        %v1524 = vmul.f32 %v1396, 0.7978846
        %v1525 = vmul.f32 %v1397, 0.7978846
        %v1526 = vmul.f32 %v1398, 0.7978846
        %v1527 = vmul.f32 %v1399, 0.7978846
        %v1528 = vmul.f32 %v1400, 0.7978846
        %v1529 = vmul.f32 %v1401, 0.7978846
        %v1530 = vmul.f32 %v1402, 0.7978846
        %v1531 = vmul.f32 %v1403, 0.7978846
        %v1532 = vmul.f32 %v1404, 0.7978846
        %v1533 = vmul.f32 %v1405, 0.7978846
        %v1534 = vmul.f32 %v1406, 0.7978846
        %v1535 = vmul.f32 %v1407, 0.7978846
        %v1536 = vmul.f32 %v1408, 0.7978846
        %v1537 = vmul.f32 %v1409, 0.7978846
        %v1538 = vmul.f32 %v1410, 0.7978846
        %v1539 = vmul.f32 %v1411, 0.7978846
        %v1540 = vmul.f32 %v1412, 0.7978846
        %v1541 = vmul.f32 %v1413, 0.7978846
        %v1542 = vmul.f32 %v1414, 0.7978846
        %v1543 = vmul.f32 %v1415, 0.7978846
        %v1544 = vmul.f32 %v1416, 0.7978846
        %v1545 = vmul.f32 %v1417, 0.7978846
        %v1546 = vmul.f32 %v1418, 0.7978846
        %v1547 = vmul.f32 %v1419, 0.7978846
        %v1548 = vmul.f32 %v1420, 0.7978846
        %v1549 = vmul.f32 %v1421, 0.7978846
        %v1550 = vmul.f32 %v1422, 0.7978846
        %v1551 = vmul.f32 %v1423, 0.7978846
        %v1552 = vmul.f32 %v1424, 0.7978846
        %v1553 = vmul.f32 %v1425, 0.7978846
        %v1554 = vmul.f32 %v1426, 0.7978846
        %v1555 = vmul.f32 %v1427, 0.7978846
        %v1556 = vmul.f32 %v1428, 0.7978846
        %v1557 = vmul.f32 %v1429, 0.7978846
        %v1558 = vmul.f32 %v1430, 0.7978846
        %v1559 = vmul.f32 %v1431, 0.7978846
        %v1560 = vmul.f32 %v1432, 0.7978846
        %v1561 = vmul.f32 %v1433, 0.7978846
        %v1562 = vmul.f32 %v1434, 0.7978846
        %v1563 = vmul.f32 %v1435, 0.7978846
        %v1564 = vmul.f32 %v1436, 0.7978846
        %v1565 = vmul.f32 %v1437, 0.7978846
        %v1566 = vmul.f32 %v1438, 0.7978846
        %v1567 = vmul.f32 %v1439, 0.7978846
        %v1568 = vmul.f32 %v1440, 0.7978846
        %v1569 = vmul.f32 %v1441, 0.7978846
        %v1570 = vmul.f32 %v1442, 0.7978846
        %v1571 = vmul.f32 %v1443, 0.7978846
        %v1572 = vmul.f32 %v1444, 0.7978846
        %v1573 = vmul.f32 %v1445, 0.7978846
        %v1574 = vmul.f32 %v1446, 0.7978846
        %v1575 = vmul.f32 %v1447, 0.7978846
        %v1576 = vmul.f32 %v1448, 0.7978846
        %v1577 = vmul.f32 %v1449, 0.7978846
        %v1578 = vmul.f32 %v1450, 0.7978846
        %v1579 = vmul.f32 %v1451, 0.7978846
        %v1580 = vmul.f32 %v1452, 0.7978846
        %v1581 = vmul.f32 %v1453, 0.7978846
        %v1582 = vmul.f32 %v1454, 0.7978846
        %v1583 = vmul.f32 %v1455, 0.7978846
        %v1584 = vmul.f32 %v1456, 0.7978846
        %v1585 = vmul.f32 %v1457, 0.7978846
        %v1586 = vmul.f32 %v1458, 0.7978846
        %v1587 = vmul.f32 %v1459, 0.7978846
        %v1588 = vmul.f32 %v1460, 0.7978846
        %v1589 = vmul.f32 %v1461, 0.7978846
        %v1590 = vmul.f32 %v1462, 0.7978846
        %v1591 = vmul.f32 %v1463, 0.7978846
        %v1592 = vmul.f32 %v1464, 0.7978846
        %v1593 = vmul.f32 %v1465, 0.7978846
        %v1594 = vmul.f32 %v1466, 0.7978846
        %v1595 = vmul.f32 %v1467, 0.7978846
        %v1596 = vmul.f32 %v1468, 0.7978846
        %v1597 = vmul.f32 %v1469, 0.7978846
        %v1598 = vmul.f32 %v1470, 0.7978846
        %v1599 = vmul.f32 %v1471, 0.7978846
        %v1600 = vtanh.pop %v1472
        %v1601 = vtanh.pop %v1473
        %v1602 = vtanh.pop %v1474
        %v1603 = vtanh.pop %v1475
        %v1604 = vtanh.pop %v1476
        %v1605 = vtanh.pop %v1477
        %v1606 = vtanh.pop %v1478
        %v1607 = vtanh.pop %v1479
        %v1608 = vtanh.pop %v1480
        %v1609 = vtanh.pop %v1481
        %v1610 = vtanh.pop %v1482
        %v1611 = vtanh.pop %v1483
        %v1612 = vtanh.pop %v1484
        %v1613 = vtanh.pop %v1485
        %v1614 = vtanh.pop %v1486
        %v1615 = vtanh.pop %v1487
        %v1616 = vtanh.pop %v1488
        %v1617 = vtanh.pop %v1489
        %v1618 = vtanh.pop %v1490
        %v1619 = vtanh.pop %v1491
        %v1620 = vtanh.pop %v1492
        %v1621 = vtanh.pop %v1493
        %v1622 = vtanh.pop %v1494
        %v1623 = vtanh.pop %v1495
        %v1624 = vtanh.pop %v1496
        %v1625 = vtanh.pop %v1497
        %v1626 = vtanh.pop %v1498
        %v1627 = vtanh.pop %v1499
        %v1628 = vtanh.pop %v1500
        %v1629 = vtanh.pop %v1501
        %v1630 = vtanh.pop %v1502
        %v1631 = vtanh.pop %v1503
        %v1632 = vtanh.pop %v1504
        %v1633 = vtanh.pop %v1505
        %v1634 = vtanh.pop %v1506
        %v1635 = vtanh.pop %v1507
        %v1636 = vtanh.pop %v1508
        %v1637 = vtanh.pop %v1509
        %v1638 = vtanh.pop %v1510
        %v1639 = vtanh.pop %v1511
        %v1640 = vtanh.pop %v1512
        %v1641 = vtanh.pop %v1513
        %v1642 = vtanh.pop %v1514
        %v1643 = vtanh.pop %v1515
        %v1644 = vtanh.pop %v1516
        %v1645 = vtanh.pop %v1517
        %v1646 = vtanh.pop %v1518
        %v1647 = vtanh.pop %v1519
        %v1648 = vtanh.pop %v1520
        %v1649 = vtanh.pop %v1521
        %v1650 = vtanh.pop %v1522
        %v1651 = vtanh.pop %v1523
        %v1652 = vtanh.pop %v1524
        %v1653 = vtanh.pop %v1525
        %v1654 = vtanh.pop %v1526
        %v1655 = vtanh.pop %v1527
        %v1656 = vtanh.pop %v1528
        %v1657 = vtanh.pop %v1529
        %v1658 = vtanh.pop %v1530
        %v1659 = vtanh.pop %v1531
        %v1660 = vtanh.pop %v1532
        %v1661 = vtanh.pop %v1533
        %v1662 = vtanh.pop %v1534
        %v1663 = vtanh.pop %v1535
        %v1664 = vtanh.pop %v1536
        %v1665 = vtanh.pop %v1537
        %v1666 = vtanh.pop %v1538
        %v1667 = vtanh.pop %v1539
        %v1668 = vtanh.pop %v1540
        %v1669 = vtanh.pop %v1541
        %v1670 = vtanh.pop %v1542
        %v1671 = vtanh.pop %v1543
        %v1672 = vtanh.pop %v1544
        %v1673 = vtanh.pop %v1545
        %v1674 = vtanh.pop %v1546
        %v1675 = vtanh.pop %v1547
        %v1676 = vtanh.pop %v1548
        %v1677 = vtanh.pop %v1549
        %v1678 = vtanh.pop %v1550
        %v1679 = vtanh.pop %v1551
        %v1680 = vtanh.pop %v1552
        %v1681 = vtanh.pop %v1553
        %v1682 = vtanh.pop %v1554
        %v1683 = vtanh.pop %v1555
        %v1684 = vtanh.pop %v1556
        %v1685 = vtanh.pop %v1557
        %v1686 = vtanh.pop %v1558
        %v1687 = vtanh.pop %v1559
        %v1688 = vtanh.pop %v1560
        %v1689 = vtanh.pop %v1561
        %v1690 = vtanh.pop %v1562
        %v1691 = vtanh.pop %v1563
        %v1692 = vtanh.pop %v1564
        %v1693 = vtanh.pop %v1565
        %v1694 = vtanh.pop %v1566
        %v1695 = vtanh.pop %v1567
        %v1696 = vtanh.pop %v1568
        %v1697 = vtanh.pop %v1569
        %v1698 = vtanh.pop %v1570
        %v1699 = vtanh.pop %v1571
        %v1700 = vtanh.pop %v1572
        %v1701 = vtanh.pop %v1573
        %v1702 = vtanh.pop %v1574
        %v1703 = vtanh.pop %v1575
        %v1704 = vtanh.pop %v1576
        %v1705 = vtanh.pop %v1577
        %v1706 = vtanh.pop %v1578
        %v1707 = vtanh.pop %v1579
        %v1708 = vtanh.pop %v1580
        %v1709 = vtanh.pop %v1581
        %v1710 = vtanh.pop %v1582
        %v1711 = vtanh.pop %v1583
        %v1712 = vtanh.pop %v1584
        %v1713 = vtanh.pop %v1585
        %v1714 = vtanh.pop %v1586
        %v1715 = vtanh.pop %v1587
        %v1716 = vtanh.pop %v1588
        %v1717 = vtanh.pop %v1589
        %v1718 = vtanh.pop %v1590
        %v1719 = vtanh.pop %v1591
        %v1720 = vtanh.pop %v1592
        %v1721 = vtanh.pop %v1593
        %v1722 = vtanh.pop %v1594
        %v1723 = vtanh.pop %v1595
        %v1724 = vtanh.pop %v1596
        %v1725 = vtanh.pop %v1597
        %v1726 = vtanh.pop %v1598
        %v1727 = vtanh.pop %v1599
        %v1728 = vadd.f32 %v1600, 1.0
        %v1729 = vadd.f32 %v1601, 1.0
        %v1730 = vadd.f32 %v1602, 1.0
        %v1731 = vadd.f32 %v1603, 1.0
        %v1732 = vadd.f32 %v1604, 1.0
        %v1733 = vadd.f32 %v1605, 1.0
        %v1734 = vadd.f32 %v1606, 1.0
        %v1735 = vadd.f32 %v1607, 1.0
        %v1736 = vadd.f32 %v1608, 1.0
        %v1737 = vadd.f32 %v1609, 1.0
        %v1738 = vadd.f32 %v1610, 1.0
        %v1739 = vadd.f32 %v1611, 1.0
        %v1740 = vadd.f32 %v1612, 1.0
        %v1741 = vadd.f32 %v1613, 1.0
        %v1742 = vadd.f32 %v1614, 1.0
        %v1743 = vadd.f32 %v1615, 1.0
        %v1744 = vadd.f32 %v1616, 1.0
        %v1745 = vadd.f32 %v1617, 1.0
        %v1746 = vadd.f32 %v1618, 1.0
        %v1747 = vadd.f32 %v1619, 1.0
        %v1748 = vadd.f32 %v1620, 1.0
        %v1749 = vadd.f32 %v1621, 1.0
        %v1750 = vadd.f32 %v1622, 1.0
        %v1751 = vadd.f32 %v1623, 1.0
        %v1752 = vadd.f32 %v1624, 1.0
        %v1753 = vadd.f32 %v1625, 1.0
        %v1754 = vadd.f32 %v1626, 1.0
        %v1755 = vadd.f32 %v1627, 1.0
        %v1756 = vadd.f32 %v1628, 1.0
        %v1757 = vadd.f32 %v1629, 1.0
        %v1758 = vadd.f32 %v1630, 1.0
        %v1759 = vadd.f32 %v1631, 1.0
        %v1760 = vadd.f32 %v1632, 1.0
        %v1761 = vadd.f32 %v1633, 1.0
        %v1762 = vadd.f32 %v1634, 1.0
        %v1763 = vadd.f32 %v1635, 1.0
        %v1764 = vadd.f32 %v1636, 1.0
        %v1765 = vadd.f32 %v1637, 1.0
        %v1766 = vadd.f32 %v1638, 1.0
        %v1767 = vadd.f32 %v1639, 1.0
        %v1768 = vadd.f32 %v1640, 1.0
        %v1769 = vadd.f32 %v1641, 1.0
        %v1770 = vadd.f32 %v1642, 1.0
        %v1771 = vadd.f32 %v1643, 1.0
        %v1772 = vadd.f32 %v1644, 1.0
        %v1773 = vadd.f32 %v1645, 1.0
        %v1774 = vadd.f32 %v1646, 1.0
        %v1775 = vadd.f32 %v1647, 1.0
        %v1776 = vadd.f32 %v1648, 1.0
        %v1777 = vadd.f32 %v1649, 1.0
        %v1778 = vadd.f32 %v1650, 1.0
        %v1779 = vadd.f32 %v1651, 1.0
        %v1780 = vadd.f32 %v1652, 1.0
        %v1781 = vadd.f32 %v1653, 1.0
        %v1782 = vadd.f32 %v1654, 1.0
        %v1783 = vadd.f32 %v1655, 1.0
        %v1784 = vadd.f32 %v1656, 1.0
        %v1785 = vadd.f32 %v1657, 1.0
        %v1786 = vadd.f32 %v1658, 1.0
        %v1787 = vadd.f32 %v1659, 1.0
        %v1788 = vadd.f32 %v1660, 1.0
        %v1789 = vadd.f32 %v1661, 1.0
        %v1790 = vadd.f32 %v1662, 1.0
        %v1791 = vadd.f32 %v1663, 1.0
        %v1792 = vadd.f32 %v1664, 1.0
        %v1793 = vadd.f32 %v1665, 1.0
        %v1794 = vadd.f32 %v1666, 1.0
        %v1795 = vadd.f32 %v1667, 1.0
        %v1796 = vadd.f32 %v1668, 1.0
        %v1797 = vadd.f32 %v1669, 1.0
        %v1798 = vadd.f32 %v1670, 1.0
        %v1799 = vadd.f32 %v1671, 1.0
        %v1800 = vadd.f32 %v1672, 1.0
        %v1801 = vadd.f32 %v1673, 1.0
        %v1802 = vadd.f32 %v1674, 1.0
        %v1803 = vadd.f32 %v1675, 1.0
        %v1804 = vadd.f32 %v1676, 1.0
        %v1805 = vadd.f32 %v1677, 1.0
        %v1806 = vadd.f32 %v1678, 1.0
        %v1807 = vadd.f32 %v1679, 1.0
        %v1808 = vadd.f32 %v1680, 1.0
        %v1809 = vadd.f32 %v1681, 1.0
        %v1810 = vadd.f32 %v1682, 1.0
        %v1811 = vadd.f32 %v1683, 1.0
        %v1812 = vadd.f32 %v1684, 1.0
        %v1813 = vadd.f32 %v1685, 1.0
        %v1814 = vadd.f32 %v1686, 1.0
        %v1815 = vadd.f32 %v1687, 1.0
        %v1816 = vadd.f32 %v1688, 1.0
        %v1817 = vadd.f32 %v1689, 1.0
        %v1818 = vadd.f32 %v1690, 1.0
        %v1819 = vadd.f32 %v1691, 1.0
        %v1820 = vadd.f32 %v1692, 1.0
        %v1821 = vadd.f32 %v1693, 1.0
        %v1822 = vadd.f32 %v1694, 1.0
        %v1823 = vadd.f32 %v1695, 1.0
        %v1824 = vadd.f32 %v1696, 1.0
        %v1825 = vadd.f32 %v1697, 1.0
        %v1826 = vadd.f32 %v1698, 1.0
        %v1827 = vadd.f32 %v1699, 1.0
        %v1828 = vadd.f32 %v1700, 1.0
        %v1829 = vadd.f32 %v1701, 1.0
        %v1830 = vadd.f32 %v1702, 1.0
        %v1831 = vadd.f32 %v1703, 1.0
        %v1832 = vadd.f32 %v1704, 1.0
        %v1833 = vadd.f32 %v1705, 1.0
        %v1834 = vadd.f32 %v1706, 1.0
        %v1835 = vadd.f32 %v1707, 1.0
        %v1836 = vadd.f32 %v1708, 1.0
        %v1837 = vadd.f32 %v1709, 1.0
        %v1838 = vadd.f32 %v1710, 1.0
        %v1839 = vadd.f32 %v1711, 1.0
        %v1840 = vadd.f32 %v1712, 1.0
        %v1841 = vadd.f32 %v1713, 1.0
        %v1842 = vadd.f32 %v1714, 1.0
        %v1843 = vadd.f32 %v1715, 1.0
        %v1844 = vadd.f32 %v1716, 1.0
        %v1845 = vadd.f32 %v1717, 1.0
        %v1846 = vadd.f32 %v1718, 1.0
        %v1847 = vadd.f32 %v1719, 1.0
        %v1848 = vadd.f32 %v1720, 1.0
        %v1849 = vadd.f32 %v1721, 1.0
        %v1850 = vadd.f32 %v1722, 1.0
        %v1851 = vadd.f32 %v1723, 1.0
        %v1852 = vadd.f32 %v1724, 1.0
        %v1853 = vadd.f32 %v1725, 1.0
        %v1854 = vadd.f32 %v1726, 1.0
        %v1855 = vadd.f32 %v1727, 1.0
        %v1856 = vmul.f32 %v832, %v1728
        %v1857 = vmul.f32 %v833, %v1729
        %v1858 = vmul.f32 %v834, %v1730
        %v1859 = vmul.f32 %v835, %v1731
        %v1860 = vmul.f32 %v836, %v1732
        %v1861 = vmul.f32 %v837, %v1733
        %v1862 = vmul.f32 %v838, %v1734
        %v1863 = vmul.f32 %v839, %v1735
        %v1864 = vmul.f32 %v840, %v1736
        %v1865 = vmul.f32 %v841, %v1737
        %v1866 = vmul.f32 %v842, %v1738
        %v1867 = vmul.f32 %v843, %v1739
        %v1868 = vmul.f32 %v844, %v1740
        %v1869 = vmul.f32 %v845, %v1741
        %v1870 = vmul.f32 %v846, %v1742
        %v1871 = vmul.f32 %v847, %v1743
        %v1872 = vmul.f32 %v848, %v1744
        %v1873 = vmul.f32 %v849, %v1745
        %v1874 = vmul.f32 %v850, %v1746
        %v1875 = vmul.f32 %v851, %v1747
        %v1876 = vmul.f32 %v852, %v1748
        %v1877 = vmul.f32 %v853, %v1749
        %v1878 = vmul.f32 %v854, %v1750
        %v1879 = vmul.f32 %v855, %v1751
        %v1880 = vmul.f32 %v856, %v1752
        %v1881 = vmul.f32 %v857, %v1753
        %v1882 = vmul.f32 %v858, %v1754
        %v1883 = vmul.f32 %v859, %v1755
        %v1884 = vmul.f32 %v860, %v1756
        %v1885 = vmul.f32 %v861, %v1757
        %v1886 = vmul.f32 %v862, %v1758
        %v1887 = vmul.f32 %v863, %v1759
        %v1888 = vmul.f32 %v864, %v1760
        %v1889 = vmul.f32 %v865, %v1761
        %v1890 = vmul.f32 %v866, %v1762
        %v1891 = vmul.f32 %v867, %v1763
        %v1892 = vmul.f32 %v868, %v1764
        %v1893 = vmul.f32 %v869, %v1765
        %v1894 = vmul.f32 %v870, %v1766
        %v1895 = vmul.f32 %v871, %v1767
        %v1896 = vmul.f32 %v872, %v1768
        %v1897 = vmul.f32 %v873, %v1769
        %v1898 = vmul.f32 %v874, %v1770
        %v1899 = vmul.f32 %v875, %v1771
        %v1900 = vmul.f32 %v876, %v1772
        %v1901 = vmul.f32 %v877, %v1773
        %v1902 = vmul.f32 %v878, %v1774
        %v1903 = vmul.f32 %v879, %v1775
        %v1904 = vmul.f32 %v880, %v1776
        %v1905 = vmul.f32 %v881, %v1777
        %v1906 = vmul.f32 %v882, %v1778
        %v1907 = vmul.f32 %v883, %v1779
        %v1908 = vmul.f32 %v884, %v1780
        %v1909 = vmul.f32 %v885, %v1781
        %v1910 = vmul.f32 %v886, %v1782
        %v1911 = vmul.f32 %v887, %v1783
        %v1912 = vmul.f32 %v888, %v1784
        %v1913 = vmul.f32 %v889, %v1785
        %v1914 = vmul.f32 %v890, %v1786
        %v1915 = vmul.f32 %v891, %v1787
        %v1916 = vmul.f32 %v892, %v1788
        %v1917 = vmul.f32 %v893, %v1789
        %v1918 = vmul.f32 %v894, %v1790
        %v1919 = vmul.f32 %v895, %v1791
        %v1920 = vmul.f32 %v896, %v1792
        %v1921 = vmul.f32 %v897, %v1793
        %v1922 = vmul.f32 %v898, %v1794
        %v1923 = vmul.f32 %v899, %v1795
        %v1924 = vmul.f32 %v900, %v1796
        %v1925 = vmul.f32 %v901, %v1797
        %v1926 = vmul.f32 %v902, %v1798
        %v1927 = vmul.f32 %v903, %v1799
        %v1928 = vmul.f32 %v904, %v1800
        %v1929 = vmul.f32 %v905, %v1801
        %v1930 = vmul.f32 %v906, %v1802
        %v1931 = vmul.f32 %v907, %v1803
        %v1932 = vmul.f32 %v908, %v1804
        %v1933 = vmul.f32 %v909, %v1805
        %v1934 = vmul.f32 %v910, %v1806
        %v1935 = vmul.f32 %v911, %v1807
        %v1936 = vmul.f32 %v912, %v1808
        %v1937 = vmul.f32 %v913, %v1809
        %v1938 = vmul.f32 %v914, %v1810
        %v1939 = vmul.f32 %v915, %v1811
        %v1940 = vmul.f32 %v916, %v1812
        %v1941 = vmul.f32 %v917, %v1813
        %v1942 = vmul.f32 %v918, %v1814
        %v1943 = vmul.f32 %v919, %v1815
        %v1944 = vmul.f32 %v920, %v1816
        %v1945 = vmul.f32 %v921, %v1817
        %v1946 = vmul.f32 %v922, %v1818
        %v1947 = vmul.f32 %v923, %v1819
        %v1948 = vmul.f32 %v924, %v1820
        %v1949 = vmul.f32 %v925, %v1821
        %v1950 = vmul.f32 %v926, %v1822
        %v1951 = vmul.f32 %v927, %v1823
        %v1952 = vmul.f32 %v928, %v1824
        %v1953 = vmul.f32 %v929, %v1825
        %v1954 = vmul.f32 %v930, %v1826
        %v1955 = vmul.f32 %v931, %v1827
        %v1956 = vmul.f32 %v932, %v1828
        %v1957 = vmul.f32 %v933, %v1829
        %v1958 = vmul.f32 %v934, %v1830
        %v1959 = vmul.f32 %v935, %v1831
        %v1960 = vmul.f32 %v936, %v1832
        %v1961 = vmul.f32 %v937, %v1833
        %v1962 = vmul.f32 %v938, %v1834
        %v1963 = vmul.f32 %v939, %v1835
        %v1964 = vmul.f32 %v940, %v1836
        %v1965 = vmul.f32 %v941, %v1837
        %v1966 = vmul.f32 %v942, %v1838
        %v1967 = vmul.f32 %v943, %v1839
        %v1968 = vmul.f32 %v944, %v1840
        %v1969 = vmul.f32 %v945, %v1841
        %v1970 = vmul.f32 %v946, %v1842
        %v1971 = vmul.f32 %v947, %v1843
        %v1972 = vmul.f32 %v948, %v1844
        %v1973 = vmul.f32 %v949, %v1845
        %v1974 = vmul.f32 %v950, %v1846
        %v1975 = vmul.f32 %v951, %v1847
        %v1976 = vmul.f32 %v952, %v1848
        %v1977 = vmul.f32 %v953, %v1849
        %v1978 = vmul.f32 %v954, %v1850
        %v1979 = vmul.f32 %v955, %v1851
        %v1980 = vmul.f32 %v956, %v1852
        %v1981 = vmul.f32 %v957, %v1853
        %v1982 = vmul.f32 %v958, %v1854
        %v1983 = vmul.f32 %v959, %v1855
        %v1984 = vpack.c.bf16 %v1860, %v1856
        %v1985 = vpack.c.bf16 %v1861, %v1857
        %v1986 = vpack.c.bf16 %v1862, %v1858
        %v1987 = vpack.c.bf16 %v1863, %v1859
        %v1988 = vpack.c.bf16 %v1868, %v1864
        %v1989 = vpack.c.bf16 %v1869, %v1865
        %v1990 = vpack.c.bf16 %v1870, %v1866
        %v1991 = vpack.c.bf16 %v1871, %v1867
        %v1992 = vpack.c.bf16 %v1876, %v1872
        %v1993 = vpack.c.bf16 %v1877, %v1873
        %v1994 = vpack.c.bf16 %v1878, %v1874
        %v1995 = vpack.c.bf16 %v1879, %v1875
        %v1996 = vpack.c.bf16 %v1884, %v1880
        %v1997 = vpack.c.bf16 %v1885, %v1881
        %v1998 = vpack.c.bf16 %v1886, %v1882
        %v1999 = vpack.c.bf16 %v1887, %v1883
        %v2000 = vpack.c.bf16 %v1892, %v1888
        %v2001 = vpack.c.bf16 %v1893, %v1889
        %v2002 = vpack.c.bf16 %v1894, %v1890
        %v2003 = vpack.c.bf16 %v1895, %v1891
        %v2004 = vpack.c.bf16 %v1900, %v1896
        %v2005 = vpack.c.bf16 %v1901, %v1897
        %v2006 = vpack.c.bf16 %v1902, %v1898
        %v2007 = vpack.c.bf16 %v1903, %v1899
        %v2008 = vpack.c.bf16 %v1908, %v1904
        %v2009 = vpack.c.bf16 %v1909, %v1905
        %v2010 = vpack.c.bf16 %v1910, %v1906
        %v2011 = vpack.c.bf16 %v1911, %v1907
        %v2012 = vpack.c.bf16 %v1916, %v1912
        %v2013 = vpack.c.bf16 %v1917, %v1913
        %v2014 = vpack.c.bf16 %v1918, %v1914
        %v2015 = vpack.c.bf16 %v1919, %v1915
        %v2016 = vpack.c.bf16 %v1924, %v1920
        %v2017 = vpack.c.bf16 %v1925, %v1921
        %v2018 = vpack.c.bf16 %v1926, %v1922
        %v2019 = vpack.c.bf16 %v1927, %v1923
        %v2020 = vpack.c.bf16 %v1932, %v1928
        %v2021 = vpack.c.bf16 %v1933, %v1929
        %v2022 = vpack.c.bf16 %v1934, %v1930
        %v2023 = vpack.c.bf16 %v1935, %v1931
        %v2024 = vpack.c.bf16 %v1940, %v1936
        %v2025 = vpack.c.bf16 %v1941, %v1937
        %v2026 = vpack.c.bf16 %v1942, %v1938
        %v2027 = vpack.c.bf16 %v1943, %v1939
        %v2028 = vpack.c.bf16 %v1948, %v1944
        %v2029 = vpack.c.bf16 %v1949, %v1945
        %v2030 = vpack.c.bf16 %v1950, %v1946
        %v2031 = vpack.c.bf16 %v1951, %v1947
        %v2032 = vpack.c.bf16 %v1956, %v1952
        %v2033 = vpack.c.bf16 %v1957, %v1953
        %v2034 = vpack.c.bf16 %v1958, %v1954
        %v2035 = vpack.c.bf16 %v1959, %v1955
        %v2036 = vpack.c.bf16 %v1964, %v1960
        %v2037 = vpack.c.bf16 %v1965, %v1961
        %v2038 = vpack.c.bf16 %v1966, %v1962
        %v2039 = vpack.c.bf16 %v1967, %v1963
        %v2040 = vpack.c.bf16 %v1972, %v1968
        %v2041 = vpack.c.bf16 %v1973, %v1969
        %v2042 = vpack.c.bf16 %v1974, %v1970
        %v2043 = vpack.c.bf16 %v1975, %v1971
        %v2044 = vpack.c.bf16 %v1980, %v1976
        %v2045 = vpack.c.bf16 %v1981, %v1977
        %v2046 = vpack.c.bf16 %v1982, %v1978
        %v2047 = vpack.c.bf16 %v1983, %v1979
        %v2048 = vld [vmem:[%s3] sm:$0xf]
        %v2049 = vld [vmem:[%s3 + $0x4] sm:$0xf]
        %v2050 = vld [vmem:[%s3 + $0x8] sm:$0xf]
        %v2051 = vld [vmem:[%s3 + $0xc] sm:$0xf]
        %v2052 = vld [vmem:[%s3 + $0x10] sm:$0xf]
        %v2053 = vld [vmem:[%s3 + $0x14] sm:$0xf]
        %v2054 = vld [vmem:[%s3 + $0x18] sm:$0xf]
        %v2055 = vld [vmem:[%s3 + $0x1c] sm:$0xf]
        %v2056 = vld [vmem:[%s3 + $0x20] sm:$0xf]
        %v2057 = vld [vmem:[%s3 + $0x24] sm:$0xf]
        %v2058 = vld [vmem:[%s3 + $0x28] sm:$0xf]
        %v2059 = vld [vmem:[%s3 + $0x2c] sm:$0xf]
        %v2060 = vld [vmem:[%s3 + $0x30] sm:$0xf]
        %v2061 = vld [vmem:[%s3 + $0x34] sm:$0xf]
        %v2062 = vld [vmem:[%s3 + $0x38] sm:$0xf]
        %v2063 = vld [vmem:[%s3 + $0x3c] sm:$0xf]
        %v2064 = vld [vmem:[%s3 + $0x40] sm:$0xf]
        %v2065 = vld [vmem:[%s3 + $0x44] sm:$0xf]
        %v2066 = vld [vmem:[%s3 + $0x48] sm:$0xf]
        %v2067 = vld [vmem:[%s3 + $0x4c] sm:$0xf]
        %v2068 = vld [vmem:[%s3 + $0x50] sm:$0xf]
        %v2069 = vld [vmem:[%s3 + $0x54] sm:$0xf]
        %v2070 = vld [vmem:[%s3 + $0x58] sm:$0xf]
        %v2071 = vld [vmem:[%s3 + $0x5c] sm:$0xf]
        %v2072 = vld [vmem:[%s3 + $0x60] sm:$0xf]
        %v2073 = vld [vmem:[%s3 + $0x64] sm:$0xf]
        %v2074 = vld [vmem:[%s3 + $0x68] sm:$0xf]
        %v2075 = vld [vmem:[%s3 + $0x6c] sm:$0xf]
        %v2076 = vld [vmem:[%s3 + $0x70] sm:$0xf]
        %v2077 = vld [vmem:[%s3 + $0x74] sm:$0xf]
        %v2078 = vld [vmem:[%s3 + $0x78] sm:$0xf]
        %v2079 = vld [vmem:[%s3 + $0x7c] sm:$0xf]
        %v2080 = vld [vmem:[%s3 + $0x80] sm:$0xf]
        %v2081 = vld [vmem:[%s3 + $0x84] sm:$0xf]
        %v2082 = vld [vmem:[%s3 + $0x88] sm:$0xf]
        %v2083 = vld [vmem:[%s3 + $0x8c] sm:$0xf]
        %v2084 = vld [vmem:[%s3 + $0x90] sm:$0xf]
        %v2085 = vld [vmem:[%s3 + $0x94] sm:$0xf]
        %v2086 = vld [vmem:[%s3 + $0x98] sm:$0xf]
        %v2087 = vld [vmem:[%s3 + $0x9c] sm:$0xf]
        %v2088 = vld [vmem:[%s3 + $0xa0] sm:$0xf]
        %v2089 = vld [vmem:[%s3 + $0xa4] sm:$0xf]
        %v2090 = vld [vmem:[%s3 + $0xa8] sm:$0xf]
        %v2091 = vld [vmem:[%s3 + $0xac] sm:$0xf]
        %v2092 = vld [vmem:[%s3 + $0xb0] sm:$0xf]
        %v2093 = vld [vmem:[%s3 + $0xb4] sm:$0xf]
        %v2094 = vld [vmem:[%s3 + $0xb8] sm:$0xf]
        %v2095 = vld [vmem:[%s3 + $0xbc] sm:$0xf]
        %v2096 = vld [vmem:[%s3 + $0xc0] sm:$0xf]
        %v2097 = vld [vmem:[%s3 + $0xc4] sm:$0xf]
        %v2098 = vld [vmem:[%s3 + $0xc8] sm:$0xf]
        %v2099 = vld [vmem:[%s3 + $0xcc] sm:$0xf]
        %v2100 = vld [vmem:[%s3 + $0xd0] sm:$0xf]
        %v2101 = vld [vmem:[%s3 + $0xd4] sm:$0xf]
        %v2102 = vld [vmem:[%s3 + $0xd8] sm:$0xf]
        %v2103 = vld [vmem:[%s3 + $0xdc] sm:$0xf]
        %v2104 = vld [vmem:[%s3 + $0xe0] sm:$0xf]
        %v2105 = vld [vmem:[%s3 + $0xe4] sm:$0xf]
        %v2106 = vld [vmem:[%s3 + $0xe8] sm:$0xf]
        %v2107 = vld [vmem:[%s3 + $0xec] sm:$0xf]
        %v2108 = vld [vmem:[%s3 + $0xf0] sm:$0xf]
        %v2109 = vld [vmem:[%s3 + $0xf4] sm:$0xf]
        %v2110 = vld [vmem:[%s3 + $0xf8] sm:$0xf]
        %v2111 = vld [vmem:[%s3 + $0xfc] sm:$0xf]
        %v2112 = vld [vmem:[%s4] sm:$0x1]
        %v2114 = vperm.slane %v2112, 0
        %v2180 = vunpack.c.l.b16 %v2048
        %v2181 = vunpack.c.l.b16 %v2049
        %v2182 = vunpack.c.l.b16 %v2050
        %v2183 = vunpack.c.l.b16 %v2051
        %v2184 = vunpack.c.l.b16 %v2052
        %v2185 = vunpack.c.l.b16 %v2053
        %v2186 = vunpack.c.l.b16 %v2054
        %v2187 = vunpack.c.l.b16 %v2055
        %v2188 = vunpack.c.l.b16 %v2056
        %v2189 = vunpack.c.l.b16 %v2057
        %v2190 = vunpack.c.l.b16 %v2058
        %v2191 = vunpack.c.l.b16 %v2059
        %v2192 = vunpack.c.l.b16 %v2060
        %v2193 = vunpack.c.l.b16 %v2061
        %v2194 = vunpack.c.l.b16 %v2062
        %v2195 = vunpack.c.l.b16 %v2063
        %v2196 = vunpack.c.l.b16 %v2064
        %v2197 = vunpack.c.l.b16 %v2065
        %v2198 = vunpack.c.l.b16 %v2066
        %v2199 = vunpack.c.l.b16 %v2067
        %v2200 = vunpack.c.l.b16 %v2068
        %v2201 = vunpack.c.l.b16 %v2069
        %v2202 = vunpack.c.l.b16 %v2070
        %v2203 = vunpack.c.l.b16 %v2071
        %v2204 = vunpack.c.l.b16 %v2072
        %v2205 = vunpack.c.l.b16 %v2073
        %v2206 = vunpack.c.l.b16 %v2074
        %v2207 = vunpack.c.l.b16 %v2075
        %v2208 = vunpack.c.l.b16 %v2076
        %v2209 = vunpack.c.l.b16 %v2077
        %v2210 = vunpack.c.l.b16 %v2078
        %v2211 = vunpack.c.l.b16 %v2079
        %v2212 = vunpack.c.l.b16 %v2080
        %v2213 = vunpack.c.l.b16 %v2081
        %v2214 = vunpack.c.l.b16 %v2082
        %v2215 = vunpack.c.l.b16 %v2083
        %v2216 = vunpack.c.l.b16 %v2084
        %v2217 = vunpack.c.l.b16 %v2085
        %v2218 = vunpack.c.l.b16 %v2086
        %v2219 = vunpack.c.l.b16 %v2087
        %v2220 = vunpack.c.l.b16 %v2088
        %v2221 = vunpack.c.l.b16 %v2089
        %v2222 = vunpack.c.l.b16 %v2090
        %v2223 = vunpack.c.l.b16 %v2091
        %v2224 = vunpack.c.l.b16 %v2092
        %v2225 = vunpack.c.l.b16 %v2093
        %v2226 = vunpack.c.l.b16 %v2094
        %v2227 = vunpack.c.l.b16 %v2095
        %v2228 = vunpack.c.l.b16 %v2096
        %v2229 = vunpack.c.l.b16 %v2097
        %v2230 = vunpack.c.l.b16 %v2098
        %v2231 = vunpack.c.l.b16 %v2099
        %v2232 = vunpack.c.l.b16 %v2100
        %v2233 = vunpack.c.l.b16 %v2101
        %v2234 = vunpack.c.l.b16 %v2102
        %v2235 = vunpack.c.l.b16 %v2103
        %v2236 = vunpack.c.l.b16 %v2104
        %v2237 = vunpack.c.l.b16 %v2105
        %v2238 = vunpack.c.l.b16 %v2106
        %v2239 = vunpack.c.l.b16 %v2107
        %v2240 = vunpack.c.l.b16 %v2108
        %v2241 = vunpack.c.l.b16 %v2109
        %v2242 = vunpack.c.l.b16 %v2110
        %v2243 = vunpack.c.l.b16 %v2111
        %v2244 = vpack.c.b16 %v2181, %v2180
        %v2245 = vpack.c.b16 %v2183, %v2182
        %v2246 = vpack.c.b16 %v2185, %v2184
        %v2247 = vpack.c.b16 %v2187, %v2186
        %v2248 = vpack.c.b16 %v2189, %v2188
        %v2249 = vpack.c.b16 %v2191, %v2190
        %v2250 = vpack.c.b16 %v2193, %v2192
        %v2251 = vpack.c.b16 %v2195, %v2194
        %v2252 = vpack.c.b16 %v2197, %v2196
        %v2253 = vpack.c.b16 %v2199, %v2198
        %v2254 = vpack.c.b16 %v2201, %v2200
        %v2255 = vpack.c.b16 %v2203, %v2202
        %v2256 = vpack.c.b16 %v2205, %v2204
        %v2257 = vpack.c.b16 %v2207, %v2206
        %v2258 = vpack.c.b16 %v2209, %v2208
        %v2259 = vpack.c.b16 %v2211, %v2210
        %v2260 = vpack.c.b16 %v2213, %v2212
        %v2261 = vpack.c.b16 %v2215, %v2214
        %v2262 = vpack.c.b16 %v2217, %v2216
        %v2263 = vpack.c.b16 %v2219, %v2218
        %v2264 = vpack.c.b16 %v2221, %v2220
        %v2265 = vpack.c.b16 %v2223, %v2222
        %v2266 = vpack.c.b16 %v2225, %v2224
        %v2267 = vpack.c.b16 %v2227, %v2226
        %v2268 = vpack.c.b16 %v2229, %v2228
        %v2269 = vpack.c.b16 %v2231, %v2230
        %v2270 = vpack.c.b16 %v2233, %v2232
        %v2271 = vpack.c.b16 %v2235, %v2234
        %v2272 = vpack.c.b16 %v2237, %v2236
        %v2273 = vpack.c.b16 %v2239, %v2238
        %v2274 = vpack.c.b16 %v2241, %v2240
        %v2275 = vpack.c.b16 %v2243, %v2242
        %2308 = vmatpush.bf16.msra.mxu0 %v2251
        %2309 = vmatpush.bf16.msra.mxu0 %v2250
        %2310 = vmatpush.bf16.msra.mxu0 %v2249
        %2311 = vmatpush.bf16.msra.mxu0 %v2248
        %2312 = vmatpush.bf16.msra.mxu0 %v2247
        %2313 = vmatpush.bf16.msra.mxu0 %v2246
        %2314 = vmatpush.bf16.msra.mxu0 %v2245
        %2315 = vmatpush.bf16.msra.mxu0 %v2244
        %2316 = vmatmul.bf16.gmra.mxu0 %v1984
        %v2317 = vpop.f32.mrf.mxu0
        %v2318 = vadd.f32 %v2114, %v2317
        %v2319 = vpop.f32.mrf.mxu0
        %v2320 = vadd.f32 %v2114, %v2319
        %2321 = vmatmul.bf16.gmra.mxu0 %v1988
        %v2322 = vpop.f32.mrf.mxu0
        %v2323 = vadd.f32 %v2114, %v2322
        %v2324 = vpop.f32.mrf.mxu0
        %v2325 = vadd.f32 %v2114, %v2324
        %2326 = vmatmul.bf16.gmra.mxu0 %v1992
        %v2327 = vpop.f32.mrf.mxu0
        %v2328 = vadd.f32 %v2114, %v2327
        %v2329 = vpop.f32.mrf.mxu0
        %v2330 = vadd.f32 %v2114, %v2329
        %2331 = vmatmul.bf16.gmra.mxu0 %v1996
        %v2332 = vpop.f32.mrf.mxu0
        %v2333 = vadd.f32 %v2114, %v2332
        %v2334 = vpop.f32.mrf.mxu0
        %v2335 = vadd.f32 %v2114, %v2334
        %2336 = vmatmul.bf16.gmra.mxu0 %v2000
        %v2337 = vpop.f32.mrf.mxu0
        %v2338 = vadd.f32 %v2114, %v2337
        %v2339 = vpop.f32.mrf.mxu0
        %v2340 = vadd.f32 %v2114, %v2339
        %2341 = vmatmul.bf16.gmra.mxu0 %v2004
        %v2342 = vpop.f32.mrf.mxu0
        %v2343 = vadd.f32 %v2114, %v2342
        %v2344 = vpop.f32.mrf.mxu0
        %v2345 = vadd.f32 %v2114, %v2344
        %2346 = vmatmul.bf16.gmra.mxu0 %v2008
        %v2347 = vpop.f32.mrf.mxu0
        %v2348 = vadd.f32 %v2114, %v2347
        %v2349 = vpop.f32.mrf.mxu0
        %v2350 = vadd.f32 %v2114, %v2349
        %2351 = vmatmul.bf16.gmra.mxu0 %v2012
        %v2352 = vpop.f32.mrf.mxu0
        %v2353 = vadd.f32 %v2114, %v2352
        %v2354 = vpop.f32.mrf.mxu0
        %v2355 = vadd.f32 %v2114, %v2354
        %2356 = vmatmul.bf16.gmra.mxu0 %v2016
        %v2357 = vpop.f32.mrf.mxu0
        %v2358 = vadd.f32 %v2114, %v2357
        %v2359 = vpop.f32.mrf.mxu0
        %v2360 = vadd.f32 %v2114, %v2359
        %2361 = vmatmul.bf16.gmra.mxu0 %v2020
        %v2362 = vpop.f32.mrf.mxu0
        %v2363 = vadd.f32 %v2114, %v2362
        %v2364 = vpop.f32.mrf.mxu0
        %v2365 = vadd.f32 %v2114, %v2364
        %2366 = vmatmul.bf16.gmra.mxu0 %v2024
        %v2367 = vpop.f32.mrf.mxu0
        %v2368 = vadd.f32 %v2114, %v2367
        %v2369 = vpop.f32.mrf.mxu0
        %v2370 = vadd.f32 %v2114, %v2369
        %2371 = vmatmul.bf16.gmra.mxu0 %v2028
        %v2372 = vpop.f32.mrf.mxu0
        %v2373 = vadd.f32 %v2114, %v2372
        %v2374 = vpop.f32.mrf.mxu0
        %v2375 = vadd.f32 %v2114, %v2374
        %2376 = vmatmul.bf16.gmra.mxu0 %v2032
        %v2377 = vpop.f32.mrf.mxu0
        %v2378 = vadd.f32 %v2114, %v2377
        %v2379 = vpop.f32.mrf.mxu0
        %v2380 = vadd.f32 %v2114, %v2379
        %2381 = vmatmul.bf16.gmra.mxu0 %v2036
        %v2382 = vpop.f32.mrf.mxu0
        %v2383 = vadd.f32 %v2114, %v2382
        %v2384 = vpop.f32.mrf.mxu0
        %v2385 = vadd.f32 %v2114, %v2384
        %2386 = vmatmul.bf16.gmra.mxu0 %v2040
        %v2387 = vpop.f32.mrf.mxu0
        %v2388 = vadd.f32 %v2114, %v2387
        %v2389 = vpop.f32.mrf.mxu0
        %v2390 = vadd.f32 %v2114, %v2389
        %2391 = vmatmul.bf16.gmra.mxu0 %v2044
        %v2392 = vpop.f32.mrf.mxu0
        %v2393 = vadd.f32 %v2114, %v2392
        %v2394 = vpop.f32.mrf.mxu0
        %v2395 = vadd.f32 %v2114, %v2394
        %2396 = vdwg.mxu0
        %2397 = vmatpush.bf16.msra.mxu0 %v2259
        %2398 = vmatpush.bf16.msra.mxu0 %v2258
        %2399 = vmatpush.bf16.msra.mxu0 %v2257
        %2400 = vmatpush.bf16.msra.mxu0 %v2256
        %2401 = vmatpush.bf16.msra.mxu0 %v2255
        %2402 = vmatpush.bf16.msra.mxu0 %v2254
        %2403 = vmatpush.bf16.msra.mxu0 %v2253
        %2404 = vmatpush.bf16.msra.mxu0 %v2252
        %2405 = vmatmul.bf16.gmra.mxu0 %v1985
        %v2406 = vpop.f32.mrf.mxu0
        %v2407 = vadd.f32 %v2318, %v2406
        %v2408 = vpop.f32.mrf.mxu0
        %v2409 = vadd.f32 %v2320, %v2408
        %2410 = vmatmul.bf16.gmra.mxu0 %v1989
        %v2411 = vpop.f32.mrf.mxu0
        %v2412 = vadd.f32 %v2323, %v2411
        %v2413 = vpop.f32.mrf.mxu0
        %v2414 = vadd.f32 %v2325, %v2413
        %2415 = vmatmul.bf16.gmra.mxu0 %v1993
        %v2416 = vpop.f32.mrf.mxu0
        %v2417 = vadd.f32 %v2328, %v2416
        %v2418 = vpop.f32.mrf.mxu0
        %v2419 = vadd.f32 %v2330, %v2418
        %2420 = vmatmul.bf16.gmra.mxu0 %v1997
        %v2421 = vpop.f32.mrf.mxu0
        %v2422 = vadd.f32 %v2333, %v2421
        %v2423 = vpop.f32.mrf.mxu0
        %v2424 = vadd.f32 %v2335, %v2423
        %2425 = vmatmul.bf16.gmra.mxu0 %v2001
        %v2426 = vpop.f32.mrf.mxu0
        %v2427 = vadd.f32 %v2338, %v2426
        %v2428 = vpop.f32.mrf.mxu0
        %v2429 = vadd.f32 %v2340, %v2428
        %2430 = vmatmul.bf16.gmra.mxu0 %v2005
        %v2431 = vpop.f32.mrf.mxu0
        %v2432 = vadd.f32 %v2343, %v2431
        %v2433 = vpop.f32.mrf.mxu0
        %v2434 = vadd.f32 %v2345, %v2433
        %2435 = vmatmul.bf16.gmra.mxu0 %v2009
        %v2436 = vpop.f32.mrf.mxu0
        %v2437 = vadd.f32 %v2348, %v2436
        %v2438 = vpop.f32.mrf.mxu0
        %v2439 = vadd.f32 %v2350, %v2438
        %2440 = vmatmul.bf16.gmra.mxu0 %v2013
        %v2441 = vpop.f32.mrf.mxu0
        %v2442 = vadd.f32 %v2353, %v2441
        %v2443 = vpop.f32.mrf.mxu0
        %v2444 = vadd.f32 %v2355, %v2443
        %2445 = vmatmul.bf16.gmra.mxu0 %v2017
        %v2446 = vpop.f32.mrf.mxu0
        %v2447 = vadd.f32 %v2358, %v2446
        %v2448 = vpop.f32.mrf.mxu0
        %v2449 = vadd.f32 %v2360, %v2448
        %2450 = vmatmul.bf16.gmra.mxu0 %v2021
        %v2451 = vpop.f32.mrf.mxu0
        %v2452 = vadd.f32 %v2363, %v2451
        %v2453 = vpop.f32.mrf.mxu0
        %v2454 = vadd.f32 %v2365, %v2453
        %2455 = vmatmul.bf16.gmra.mxu0 %v2025
        %v2456 = vpop.f32.mrf.mxu0
        %v2457 = vadd.f32 %v2368, %v2456
        %v2458 = vpop.f32.mrf.mxu0
        %v2459 = vadd.f32 %v2370, %v2458
        %2460 = vmatmul.bf16.gmra.mxu0 %v2029
        %v2461 = vpop.f32.mrf.mxu0
        %v2462 = vadd.f32 %v2373, %v2461
        %v2463 = vpop.f32.mrf.mxu0
        %v2464 = vadd.f32 %v2375, %v2463
        %2465 = vmatmul.bf16.gmra.mxu0 %v2033
        %v2466 = vpop.f32.mrf.mxu0
        %v2467 = vadd.f32 %v2378, %v2466
        %v2468 = vpop.f32.mrf.mxu0
        %v2469 = vadd.f32 %v2380, %v2468
        %2470 = vmatmul.bf16.gmra.mxu0 %v2037
        %v2471 = vpop.f32.mrf.mxu0
        %v2472 = vadd.f32 %v2383, %v2471
        %v2473 = vpop.f32.mrf.mxu0
        %v2474 = vadd.f32 %v2385, %v2473
        %2475 = vmatmul.bf16.gmra.mxu0 %v2041
        %v2476 = vpop.f32.mrf.mxu0
        %v2477 = vadd.f32 %v2388, %v2476
        %v2478 = vpop.f32.mrf.mxu0
        %v2479 = vadd.f32 %v2390, %v2478
        %2480 = vmatmul.bf16.gmra.mxu0 %v2045
        %v2481 = vpop.f32.mrf.mxu0
        %v2482 = vadd.f32 %v2393, %v2481
        %v2483 = vpop.f32.mrf.mxu0
        %v2484 = vadd.f32 %v2395, %v2483
        %2485 = vdwg.mxu0
        %2486 = vmatpush.bf16.msra.mxu0 %v2267
        %2487 = vmatpush.bf16.msra.mxu0 %v2266
        %2488 = vmatpush.bf16.msra.mxu0 %v2265
        %2489 = vmatpush.bf16.msra.mxu0 %v2264
        %2490 = vmatpush.bf16.msra.mxu0 %v2263
        %2491 = vmatpush.bf16.msra.mxu0 %v2262
        %2492 = vmatpush.bf16.msra.mxu0 %v2261
        %2493 = vmatpush.bf16.msra.mxu0 %v2260
        %2494 = vmatmul.bf16.gmra.mxu0 %v1986
        %v2495 = vpop.f32.mrf.mxu0
        %v2496 = vadd.f32 %v2407, %v2495
        %v2497 = vpop.f32.mrf.mxu0
        %v2498 = vadd.f32 %v2409, %v2497
        %2499 = vmatmul.bf16.gmra.mxu0 %v1990
        %v2500 = vpop.f32.mrf.mxu0
        %v2501 = vadd.f32 %v2412, %v2500
        %v2502 = vpop.f32.mrf.mxu0
        %v2503 = vadd.f32 %v2414, %v2502
        %2504 = vmatmul.bf16.gmra.mxu0 %v1994
        %v2505 = vpop.f32.mrf.mxu0
        %v2506 = vadd.f32 %v2417, %v2505
        %v2507 = vpop.f32.mrf.mxu0
        %v2508 = vadd.f32 %v2419, %v2507
        %2509 = vmatmul.bf16.gmra.mxu0 %v1998
        %v2510 = vpop.f32.mrf.mxu0
        %v2511 = vadd.f32 %v2422, %v2510
        %v2512 = vpop.f32.mrf.mxu0
        %v2513 = vadd.f32 %v2424, %v2512
        %2514 = vmatmul.bf16.gmra.mxu0 %v2002
        %v2515 = vpop.f32.mrf.mxu0
        %v2516 = vadd.f32 %v2427, %v2515
        %v2517 = vpop.f32.mrf.mxu0
        %v2518 = vadd.f32 %v2429, %v2517
        %2519 = vmatmul.bf16.gmra.mxu0 %v2006
        %v2520 = vpop.f32.mrf.mxu0
        %v2521 = vadd.f32 %v2432, %v2520
        %v2522 = vpop.f32.mrf.mxu0
        %v2523 = vadd.f32 %v2434, %v2522
        %2524 = vmatmul.bf16.gmra.mxu0 %v2010
        %v2525 = vpop.f32.mrf.mxu0
        %v2526 = vadd.f32 %v2437, %v2525
        %v2527 = vpop.f32.mrf.mxu0
        %v2528 = vadd.f32 %v2439, %v2527
        %2529 = vmatmul.bf16.gmra.mxu0 %v2014
        %v2530 = vpop.f32.mrf.mxu0
        %v2531 = vadd.f32 %v2442, %v2530
        %v2532 = vpop.f32.mrf.mxu0
        %v2533 = vadd.f32 %v2444, %v2532
        %2534 = vmatmul.bf16.gmra.mxu0 %v2018
        %v2535 = vpop.f32.mrf.mxu0
        %v2536 = vadd.f32 %v2447, %v2535
        %v2537 = vpop.f32.mrf.mxu0
        %v2538 = vadd.f32 %v2449, %v2537
        %2539 = vmatmul.bf16.gmra.mxu0 %v2022
        %v2540 = vpop.f32.mrf.mxu0
        %v2541 = vadd.f32 %v2452, %v2540
        %v2542 = vpop.f32.mrf.mxu0
        %v2543 = vadd.f32 %v2454, %v2542
        %2544 = vmatmul.bf16.gmra.mxu0 %v2026
        %v2545 = vpop.f32.mrf.mxu0
        %v2546 = vadd.f32 %v2457, %v2545
        %v2547 = vpop.f32.mrf.mxu0
        %v2548 = vadd.f32 %v2459, %v2547
        %2549 = vmatmul.bf16.gmra.mxu0 %v2030
        %v2550 = vpop.f32.mrf.mxu0
        %v2551 = vadd.f32 %v2462, %v2550
        %v2552 = vpop.f32.mrf.mxu0
        %v2553 = vadd.f32 %v2464, %v2552
        %2554 = vmatmul.bf16.gmra.mxu0 %v2034
        %v2555 = vpop.f32.mrf.mxu0
        %v2556 = vadd.f32 %v2467, %v2555
        %v2557 = vpop.f32.mrf.mxu0
        %v2558 = vadd.f32 %v2469, %v2557
        %2559 = vmatmul.bf16.gmra.mxu0 %v2038
        %v2560 = vpop.f32.mrf.mxu0
        %v2561 = vadd.f32 %v2472, %v2560
        %v2562 = vpop.f32.mrf.mxu0
        %v2563 = vadd.f32 %v2474, %v2562
        %2564 = vmatmul.bf16.gmra.mxu0 %v2042
        %v2565 = vpop.f32.mrf.mxu0
        %v2566 = vadd.f32 %v2477, %v2565
        %v2567 = vpop.f32.mrf.mxu0
        %v2568 = vadd.f32 %v2479, %v2567
        %2569 = vmatmul.bf16.gmra.mxu0 %v2046
        %v2570 = vpop.f32.mrf.mxu0
        %v2571 = vadd.f32 %v2482, %v2570
        %v2572 = vpop.f32.mrf.mxu0
        %v2573 = vadd.f32 %v2484, %v2572
        %2574 = vdwg.mxu0
        %2575 = vmatpush.bf16.msra.mxu0 %v2275
        %2576 = vmatpush.bf16.msra.mxu0 %v2274
        %2577 = vmatpush.bf16.msra.mxu0 %v2273
        %2578 = vmatpush.bf16.msra.mxu0 %v2272
        %2579 = vmatpush.bf16.msra.mxu0 %v2271
        %2580 = vmatpush.bf16.msra.mxu0 %v2270
        %2581 = vmatpush.bf16.msra.mxu0 %v2269
        %2582 = vmatpush.bf16.msra.mxu0 %v2268
        %2583 = vmatmul.bf16.gmra.mxu0 %v1987
        %v2584 = vpop.f32.mrf.mxu0
        %v2585 = vadd.f32 %v2496, %v2584
        %v2586 = vpop.f32.mrf.mxu0
        %v2587 = vadd.f32 %v2498, %v2586
        %2588 = vmatmul.bf16.gmra.mxu0 %v1991
        %v2589 = vpop.f32.mrf.mxu0
        %v2590 = vadd.f32 %v2501, %v2589
        %v2591 = vpop.f32.mrf.mxu0
        %v2592 = vadd.f32 %v2503, %v2591
        %2593 = vmatmul.bf16.gmra.mxu0 %v1995
        %v2594 = vpop.f32.mrf.mxu0
        %v2595 = vadd.f32 %v2506, %v2594
        %v2596 = vpop.f32.mrf.mxu0
        %v2597 = vadd.f32 %v2508, %v2596
        %2598 = vmatmul.bf16.gmra.mxu0 %v1999
        %v2599 = vpop.f32.mrf.mxu0
        %v2600 = vadd.f32 %v2511, %v2599
        %v2601 = vpop.f32.mrf.mxu0
        %v2602 = vadd.f32 %v2513, %v2601
        %2603 = vmatmul.bf16.gmra.mxu0 %v2003
        %v2604 = vpop.f32.mrf.mxu0
        %v2605 = vadd.f32 %v2516, %v2604
        %v2606 = vpop.f32.mrf.mxu0
        %v2607 = vadd.f32 %v2518, %v2606
        %2608 = vmatmul.bf16.gmra.mxu0 %v2007
        %v2609 = vpop.f32.mrf.mxu0
        %v2610 = vadd.f32 %v2521, %v2609
        %v2611 = vpop.f32.mrf.mxu0
        %v2612 = vadd.f32 %v2523, %v2611
        %2613 = vmatmul.bf16.gmra.mxu0 %v2011
        %v2614 = vpop.f32.mrf.mxu0
        %v2615 = vadd.f32 %v2526, %v2614
        %v2616 = vpop.f32.mrf.mxu0
        %v2617 = vadd.f32 %v2528, %v2616
        %2618 = vmatmul.bf16.gmra.mxu0 %v2015
        %v2619 = vpop.f32.mrf.mxu0
        %v2620 = vadd.f32 %v2531, %v2619
        %v2621 = vpop.f32.mrf.mxu0
        %v2622 = vadd.f32 %v2533, %v2621
        %2623 = vmatmul.bf16.gmra.mxu0 %v2019
        %v2624 = vpop.f32.mrf.mxu0
        %v2625 = vadd.f32 %v2536, %v2624
        %v2626 = vpop.f32.mrf.mxu0
        %v2627 = vadd.f32 %v2538, %v2626
        %2628 = vmatmul.bf16.gmra.mxu0 %v2023
        %v2629 = vpop.f32.mrf.mxu0
        %v2630 = vadd.f32 %v2541, %v2629
        %v2631 = vpop.f32.mrf.mxu0
        %v2632 = vadd.f32 %v2543, %v2631
        %2633 = vmatmul.bf16.gmra.mxu0 %v2027
        %v2634 = vpop.f32.mrf.mxu0
        %v2635 = vadd.f32 %v2546, %v2634
        %v2636 = vpop.f32.mrf.mxu0
        %v2637 = vadd.f32 %v2548, %v2636
        %2638 = vmatmul.bf16.gmra.mxu0 %v2031
        %v2639 = vpop.f32.mrf.mxu0
        %v2640 = vadd.f32 %v2551, %v2639
        %v2641 = vpop.f32.mrf.mxu0
        %v2642 = vadd.f32 %v2553, %v2641
        %2643 = vmatmul.bf16.gmra.mxu0 %v2035
        %v2644 = vpop.f32.mrf.mxu0
        %v2645 = vadd.f32 %v2556, %v2644
        %v2646 = vpop.f32.mrf.mxu0
        %v2647 = vadd.f32 %v2558, %v2646
        %2648 = vmatmul.bf16.gmra.mxu0 %v2039
        %v2649 = vpop.f32.mrf.mxu0
        %v2650 = vadd.f32 %v2561, %v2649
        %v2651 = vpop.f32.mrf.mxu0
        %v2652 = vadd.f32 %v2563, %v2651
        %2653 = vmatmul.bf16.gmra.mxu0 %v2043
        %v2654 = vpop.f32.mrf.mxu0
        %v2655 = vadd.f32 %v2566, %v2654
        %v2656 = vpop.f32.mrf.mxu0
        %v2657 = vadd.f32 %v2568, %v2656
        %2658 = vmatmul.bf16.gmra.mxu0 %v2047
        %v2659 = vpop.f32.mrf.mxu0
        %v2660 = vadd.f32 %v2571, %v2659
        %v2661 = vpop.f32.mrf.mxu0
        %v2662 = vadd.f32 %v2573, %v2661
        %2663 = vdwg.mxu0
        %2664 = vst [vmem:[%s218] sm:$0xff] %v2585
        %2665 = vst [vmem:[%s218 + $0x8] sm:$0xff] %v2587
        %2666 = vst [vmem:[%s218 + $0x10] sm:$0xff] %v2590
        %2667 = vst [vmem:[%s218 + $0x18] sm:$0xff] %v2592
        %2668 = vst [vmem:[%s218 + $0x20] sm:$0xff] %v2595
        %2669 = vst [vmem:[%s218 + $0x28] sm:$0xff] %v2597
        %2670 = vst [vmem:[%s218 + $0x30] sm:$0xff] %v2600
        %2671 = vst [vmem:[%s218 + $0x38] sm:$0xff] %v2602
        %2672 = vst [vmem:[%s218 + $0x40] sm:$0xff] %v2605
        %2673 = vst [vmem:[%s218 + $0x48] sm:$0xff] %v2607
        %2674 = vst [vmem:[%s218 + $0x50] sm:$0xff] %v2610
        %2675 = vst [vmem:[%s218 + $0x58] sm:$0xff] %v2612
        %2676 = vst [vmem:[%s218 + $0x60] sm:$0xff] %v2615
        %2677 = vst [vmem:[%s218 + $0x68] sm:$0xff] %v2617
        %2678 = vst [vmem:[%s218 + $0x70] sm:$0xff] %v2620
        %2679 = vst [vmem:[%s218 + $0x78] sm:$0xff] %v2622
        %2680 = vst [vmem:[%s218 + $0x80] sm:$0xff] %v2625
        %2681 = vst [vmem:[%s218 + $0x88] sm:$0xff] %v2627
        %2682 = vst [vmem:[%s218 + $0x90] sm:$0xff] %v2630
        %2683 = vst [vmem:[%s218 + $0x98] sm:$0xff] %v2632
        %2684 = vst [vmem:[%s218 + $0xa0] sm:$0xff] %v2635
        %2685 = vst [vmem:[%s218 + $0xa8] sm:$0xff] %v2637
        %2686 = vst [vmem:[%s218 + $0xb0] sm:$0xff] %v2640
        %2687 = vst [vmem:[%s218 + $0xb8] sm:$0xff] %v2642
        %2688 = vst [vmem:[%s218 + $0xc0] sm:$0xff] %v2645
        %2689 = vst [vmem:[%s218 + $0xc8] sm:$0xff] %v2647
        %2690 = vst [vmem:[%s218 + $0xd0] sm:$0xff] %v2650
        %2691 = vst [vmem:[%s218 + $0xd8] sm:$0xff] %v2652
        %2692 = vst [vmem:[%s218 + $0xe0] sm:$0xff] %v2655
        %2693 = vst [vmem:[%s218 + $0xe8] sm:$0xff] %v2657
        %2694 = vst [vmem:[%s218 + $0xf0] sm:$0xff] %v2660
        %2695 = vst [vmem:[%s218 + $0xf8] sm:$0xff] %v2662
        %s2696 = sand.u32 %s137, 1
        %s2697 = scalar_lea.sflag [#allocation3], %s2696
        %s2698 = sand.u32 %s137, 1
        %s2699 = smul.addr %s2698, 256
        %s2700 = scalar_lea.vmem [#allocation2], %s2699
        // Predicated region
        $region41: #{pallas_feedforward.1} parent=39 // pred_check
          %p2701 = pneg %p147
        $region42: #{pallas_feedforward.1} parent=39 // pred_check_branch
          %2703 = sbr.rel (%p2701) target = $region44
        $region43: #{pallas_feedforward.1} parent=39 // pred_region
          %s2704 = smul.u32 32, %s19
          %2706 = vsyncadd %s2697, 0
          %s2707 = smul.addr %s2704, 8
          %s2708 = scalar_lea.hbm %s5, %s2707
          %s2709 = sshll.u32 %s2700, 4
          %s2710 = int_to_ptr.vmem [resolvable:$true] %s2709
          %s2711 = sshll.u32 %s2708, 4
          %s2712 = int_to_ptr.hbm [resolvable:$true] %s2711
          %2717 = dma.vmem_to_hbm [thread:$0]  %s2710, 4096, %s2712, %s2697, 128, 128, 8
        $region44: #{pallas_feedforward.1} parent=39 // pred_fallthru
          _
      $region40: #{pallas_feedforward.1} parent=5 // pred_fallthru
        _
      %p2718 = scmp.le.s32.totalorder 2, %s14
      // Predicated region
      $region45: #{pallas_feedforward.1} parent=5 // pred_check
        %p2719 = pneg %p2718
      $region46: #{pallas_feedforward.1} parent=5 // pred_check_branch
        %2721 = sbr.rel (%p2719) target = $region48
      $region47: #{pallas_feedforward.1} parent=5 // pred_region
        %s2722 = ssub.s32 %s14, 2
        // Predicated region
        $region49: #{pallas_feedforward.1} parent=47 // pred_check
          %p2723 = pneg %p153
        $region50: #{pallas_feedforward.1} parent=47 // pred_check_branch
          %2725 = sbr.rel (%p2723) target = $region52
        $region51: #{pallas_feedforward.1} parent=47 // pred_region
          %s2726 = sand.u32 %s138, 1
          %s2727 = scalar_lea.sflag [#allocation3], %s2726
          %s2728 = sand.u32 %s138, 1
          %s2729 = smul.addr %s2728, 256
          %s2730 = scalar_lea.vmem [#allocation2], %s2729
          %2732 = dma.done %s2727, 4096
        $region52: #{pallas_feedforward.1} parent=47 // pred_fallthru
          _
      $region48: #{pallas_feedforward.1} parent=5 // pred_fallthru
        _
    $region6: #{pallas_feedforward.1} parent=1 // loop_footer
      %s18 = sadd.s32 1, %s14
    $region7: #{pallas_feedforward.1} parent=1 // loop_footer_branch
      %13 = sbr.rel target = $region3
    $region8: #{pallas_feedforward.1} parent=1 // loop_exit
      _
    %2733 = vsyncpa [#allocation3], 1
    %s2734 = scalar_lea.sflag [#allocation3], 1
    %2735 = vsyncpa %s2734, 1

</llo_original>
